<compile_context>
chip_gen: v5e
topology: v5e:2x2
jax: 0.10.0
libtpu: 0.0.40
codegen_flags: <defaults>
</compile_context>

<pallas_src>
import functools

import jax
import jax.numpy as jnp
from jax.experimental import pallas as pl
from jax.experimental.pallas import tpu as pltpu


def _stacked_lstm_kernel(T, B, H, num_layers, *refs):
    """Fused multi-layer LSTM over the whole sequence.

    refs layout:
      refs[0]                      : x_ref   (T*B, D_in)      VMEM
      refs[1 + 3l .. 3 + 3l]       : wih_l (D_l, 4H), whh_l (H, 4H), b_l (1, 4H)
      refs[1 + 3*num_layers]       : out_ref (B, H)           VMEM
      refs[2 + 3*num_layers]       : y_sc   (T*B, H)          VMEM scratch
                                     (inter-layer activations, stays on-chip)
    """
    x_ref = refs[0]
    w_refs = refs[1:1 + 3 * num_layers]
    out_ref = refs[1 + 3 * num_layers]
    y_sc = refs[2 + 3 * num_layers]

    layer_in = x_ref[...]                       # (T*B, D_in), in vregs
    h = jnp.zeros((B, H), jnp.float32)

    for layer in range(num_layers):
        wih = w_refs[3 * layer][...]            # (D_in, 4H) — loaded once
        whh = w_refs[3 * layer + 1][...]        # (H, 4H)    — loaded once
        b = w_refs[3 * layer + 2][...]          # (1, 4H)    — loaded once

        # Hoisted input projection: one big matmul per layer (no h dependency).
        g_all = (
            jnp.dot(layer_in, wih, preferred_element_type=jnp.float32) + b
        )                                       # (T*B, 4H)

        h = jnp.zeros((B, H), jnp.float32)
        c = jnp.zeros((B, H), jnp.float32)
        last_layer = layer == num_layers - 1

        # Static unroll over timesteps; h/c stay in vregs.
        for t in range(T):
            gates = g_all[t * B:(t + 1) * B, :] + jnp.dot(
                h, whh, preferred_element_type=jnp.float32
            )                                   # (B, 4H)
            # Full-vreg EUP activations, then per-gate slices.
            sig = jax.nn.sigmoid(gates)
            tnh = jnp.tanh(gates)
            i_g = sig[:, 0 * H:1 * H]
            f_g = sig[:, 1 * H:2 * H]
            g_g = tnh[:, 2 * H:3 * H]
            o_g = sig[:, 3 * H:4 * H]

            c = f_g * c + i_g * g_g
            h = o_g * jnp.tanh(c)

            if not last_layer:
                # Keep the per-step hidden state on-chip for the next layer.
                y_sc[t * B:(t + 1) * B, :] = h

        if not last_layer:
            layer_in = y_sc[...]                # (T*B, H)

    # Only the final hidden state of the last layer leaves the chip.
    out_ref[...] = h


def _stacked_lstm_call(x_2d, prepared_params, T, B):
    """x_2d: (T*B, D_in) time-major flat.  Returns final hidden state (B, H)."""
    num_layers = len(prepared_params)
    H = prepared_params[0][1].shape[0]          # whh_t has shape (H, 4H)

    flat_inputs = [x_2d]
    for (wih_t, whh_t, bias) in prepared_params:
        flat_inputs.extend([wih_t, whh_t, bias])

    vmem = pl.BlockSpec(memory_space=pltpu.MemorySpace.VMEM)
    kernel = functools.partial(_stacked_lstm_kernel, T, B, H, num_layers)

    return pl.pallas_call(
        kernel,
        out_shape=jax.ShapeDtypeStruct((B, H), jnp.float32),
        in_specs=[vmem] * len(flat_inputs),
        out_specs=vmem,
        scratch_shapes=[pltpu.VMEM((T * B, H), jnp.float32)],
    )(*flat_inputs)


def init_lstm_params(key, n_features, hidden_size, num_layers):
    """PyTorch nn.LSTM-shaped params (uniform +-1/sqrt(H))."""
    bound = 1.0 / (hidden_size ** 0.5)
    params = []
    for layer in range(num_layers):
        d_in = n_features if layer == 0 else hidden_size
        key, k1, k2, k3, k4 = jax.random.split(key, 5)
        w_ih = jax.random.uniform(k1, (4 * hidden_size, d_in), jnp.float32,
                                  -bound, bound)
        w_hh = jax.random.uniform(k2, (4 * hidden_size, hidden_size), jnp.float32,
                                  -bound, bound)
        b_ih = jax.random.uniform(k3, (4 * hidden_size,), jnp.float32, -bound, bound)
        b_hh = jax.random.uniform(k4, (4 * hidden_size,), jnp.float32, -bound, bound)
        params.append((w_ih, w_hh, b_ih, b_hh))
    return params


def prepare_params(params):
    """One-time conversion: transpose weights, fuse biases (inference-invariant)."""
    prepared = []
    for (w_ih, w_hh, b_ih, b_hh) in params:
        prepared.append((
            jnp.transpose(w_ih).astype(jnp.float32),                  # (D_in, 4H)
            jnp.transpose(w_hh).astype(jnp.float32),                  # (H, 4H)
            (b_ih + b_hh).astype(jnp.float32).reshape(1, -1),         # (1, 4H)
        ))
    return tuple(prepared)


@jax.jit
def lstm_forward(x, prepared_params):
    """x: (B, T, N_features) batch_first, like the PyTorch module.

    Returns out = output[:, -1, 0]  ->  shape (B,)
    """
    x = x.astype(jnp.float32)
    B, T, D = x.shape
    # batch_first -> time-major, flattened to (T*B, D) so in-kernel matmuls are 2-D.
    x_2d = jnp.transpose(x, (1, 0, 2)).reshape(T * B, D)
    h_final = _stacked_lstm_call(x_2d, prepared_params, T, B)        # (B, H)
    # output[:, -1, 0] in batch_first == last-layer final hidden state, lane 0.
    return h_final[:, 0]


if __name__ == "__main__":
    # Module hyperparameters (small, consistent with the forward pass)
    N_features = 4
    hidden_size = 32
    num_layers = 2
    seq_length = 8
    batch = 2

    key = jax.random.PRNGKey(0)
    key, kx = jax.random.split(key)
    x = jax.random.normal(kx, (batch, seq_length, N_features), jnp.float32)

    params = init_lstm_params(key, N_features, hidden_size, num_layers)
    prepared = prepare_params(params)

    out = lstm_forward(x, prepared)
    out = jax.block_until_ready(out)
    assert out.shape == (batch,), out.shape
    print("KERNEL_OK")
</pallas_src>

<mosaic_0001>
module attributes {stable_mosaic.version = 11 : i64} {
  func.func @_stacked_lstm_kernel(%arg0: memref<16x4xf32, #tpu.memory_space<vmem>>, %arg1: memref<4x128xf32, #tpu.memory_space<vmem>>, %arg2: memref<32x128xf32, #tpu.memory_space<vmem>>, %arg3: memref<1x128xf32, #tpu.memory_space<vmem>>, %arg4: memref<32x128xf32, #tpu.memory_space<vmem>>, %arg5: memref<32x128xf32, #tpu.memory_space<vmem>>, %arg6: memref<1x128xf32, #tpu.memory_space<vmem>>, %arg7: memref<2x32xf32, #tpu.memory_space<vmem>>, %arg8: memref<16x32xf32, #tpu.memory_space<vmem>>) attributes {dimension_semantics = [], scalar_prefetch = 0 : i64, scratch_operands = 1 : i64, tpu.core_type = #tpu.core_type<tc>} {
    %c0 = arith.constant 0 : index
    %c0_0 = arith.constant 0 : index
    %0 = vector.load %arg0[%c0, %c0_0] : memref<16x4xf32, #tpu.memory_space<vmem>>, vector<16x4xf32>
    %c0_1 = arith.constant 0 : index
    %c0_2 = arith.constant 0 : index
    %1 = vector.load %arg1[%c0_1, %c0_2] : memref<4x128xf32, #tpu.memory_space<vmem>>, vector<4x128xf32>
    %c0_3 = arith.constant 0 : index
    %c0_4 = arith.constant 0 : index
    %2 = vector.load %arg2[%c0_3, %c0_4] : memref<32x128xf32, #tpu.memory_space<vmem>>, vector<32x128xf32>
    %c0_5 = arith.constant 0 : index
    %c0_6 = arith.constant 0 : index
    %3 = vector.load %arg3[%c0_5, %c0_6] : memref<1x128xf32, #tpu.memory_space<vmem>>, vector<1x128xf32>
    %cst = arith.constant dense<0.000000e+00> : vector<16x128xf32>
    %4 = tpu.matmul %0, %1, %cst {dimension_numbers = #tpu.dot_dimension_numbers<[1], [0], [0], [1], [0, 0, 1, 1], [], []>} : vector<16x4xf32>, vector<4x128xf32>, vector<16x128xf32> -> vector<16x128xf32>
    %5 = vector.broadcast %3 : vector<1x128xf32> to vector<16x128xf32>
    %6 = arith.addf %4, %5 : vector<16x128xf32>
    %cst_7 = arith.constant 0.000000e+00 : f32
    %7 = vector.broadcast %cst_7 : f32 to vector<2x32xf32>
    %cst_8 = arith.constant 0.000000e+00 : f32
    %8 = vector.broadcast %cst_8 : f32 to vector<2x32xf32>
    %9 = vector.extract_strided_slice %6 {offsets = [0, 0], sizes = [2, 128], strides = [1, 1]} : vector<16x128xf32> to vector<2x128xf32>
    %cst_9 = arith.constant dense<0.000000e+00> : vector<2x128xf32>
    %10 = tpu.matmul %7, %2, %cst_9 {dimension_numbers = #tpu.dot_dimension_numbers<[1], [0], [0], [1], [0, 0, 1, 1], [], []>} : vector<2x32xf32>, vector<32x128xf32>, vector<2x128xf32> -> vector<2x128xf32>
    %11 = arith.addf %9, %10 : vector<2x128xf32>
    %12 = arith.negf %11 : vector<2x128xf32>
    %13 = math.exp %12 : vector<2x128xf32>
    %cst_10 = arith.constant 1.000000e+00 : f32
    %14 = vector.broadcast %cst_10 : f32 to vector<2x128xf32>
    %15 = arith.addf %14, %13 : vector<2x128xf32>
    %16 = arith.divf %14, %15 : vector<2x128xf32>
    %17 = math.tanh %11 : vector<2x128xf32>
    %18 = vector.extract_strided_slice %16 {offsets = [0, 0], sizes = [2, 32], strides = [1, 1]} : vector<2x128xf32> to vector<2x32xf32>
    %19 = vector.extract_strided_slice %16 {offsets = [0, 32], sizes = [2, 32], strides = [1, 1]} : vector<2x128xf32> to vector<2x32xf32>
    %20 = vector.extract_strided_slice %17 {offsets = [0, 64], sizes = [2, 32], strides = [1, 1]} : vector<2x128xf32> to vector<2x32xf32>
    %21 = vector.extract_strided_slice %16 {offsets = [0, 96], sizes = [2, 32], strides = [1, 1]} : vector<2x128xf32> to vector<2x32xf32>
    %22 = arith.mulf %19, %8 : vector<2x32xf32>
    %23 = arith.mulf %18, %20 : vector<2x32xf32>
    %24 = arith.addf %22, %23 : vector<2x32xf32>
    %25 = math.tanh %24 : vector<2x32xf32>
    %26 = arith.mulf %21, %25 : vector<2x32xf32>
    %c0_11 = arith.constant 0 : index
    %c0_12 = arith.constant 0 : index
    %27 = vector.load %arg8[%c0_11, %c0_12] : memref<16x32xf32, #tpu.memory_space<vmem>>, vector<2x32xf32>
    tpu.vector_store %arg8[%c0_11, %c0_12], %26 {strides = array<i32>} : memref<16x32xf32, #tpu.memory_space<vmem>>, vector<2x32xf32>,
    %28 = vector.extract_strided_slice %6 {offsets = [2, 0], sizes = [2, 128], strides = [1, 1]} : vector<16x128xf32> to vector<2x128xf32>
    %cst_13 = arith.constant dense<0.000000e+00> : vector<2x128xf32>
    %29 = tpu.matmul %26, %2, %cst_13 {dimension_numbers = #tpu.dot_dimension_numbers<[1], [0], [0], [1], [0, 0, 1, 1], [], []>} : vector<2x32xf32>, vector<32x128xf32>, vector<2x128xf32> -> vector<2x128xf32>
    %30 = arith.addf %28, %29 : vector<2x128xf32>
    %31 = arith.negf %30 : vector<2x128xf32>
    %32 = math.exp %31 : vector<2x128xf32>
    %cst_14 = arith.constant 1.000000e+00 : f32
    %33 = vector.broadcast %cst_14 : f32 to vector<2x128xf32>
    %34 = arith.addf %33, %32 : vector<2x128xf32>
    %35 = arith.divf %33, %34 : vector<2x128xf32>
    %36 = math.tanh %30 : vector<2x128xf32>
    %37 = vector.extract_strided_slice %35 {offsets = [0, 0], sizes = [2, 32], strides = [1, 1]} : vector<2x128xf32> to vector<2x32xf32>
    %38 = vector.extract_strided_slice %35 {offsets = [0, 32], sizes = [2, 32], strides = [1, 1]} : vector<2x128xf32> to vector<2x32xf32>
    %39 = vector.extract_strided_slice %36 {offsets = [0, 64], sizes = [2, 32], strides = [1, 1]} : vector<2x128xf32> to vector<2x32xf32>
    %40 = vector.extract_strided_slice %35 {offsets = [0, 96], sizes = [2, 32], strides = [1, 1]} : vector<2x128xf32> to vector<2x32xf32>
    %41 = arith.mulf %38, %24 : vector<2x32xf32>
    %42 = arith.mulf %37, %39 : vector<2x32xf32>
    %43 = arith.addf %41, %42 : vector<2x32xf32>
    %44 = math.tanh %43 : vector<2x32xf32>
    %45 = arith.mulf %40, %44 : vector<2x32xf32>
    %c2 = arith.constant 2 : index
    %c0_15 = arith.constant 0 : index
    %46 = vector.load %arg8[%c2, %c0_15] : memref<16x32xf32, #tpu.memory_space<vmem>>, vector<2x32xf32>
    tpu.vector_store %arg8[%c2, %c0_15], %45 {strides = array<i32>} : memref<16x32xf32, #tpu.memory_space<vmem>>, vector<2x32xf32>,
    %47 = vector.extract_strided_slice %6 {offsets = [4, 0], sizes = [2, 128], strides = [1, 1]} : vector<16x128xf32> to vector<2x128xf32>
    %cst_16 = arith.constant dense<0.000000e+00> : vector<2x128xf32>
    %48 = tpu.matmul %45, %2, %cst_16 {dimension_numbers = #tpu.dot_dimension_numbers<[1], [0], [0], [1], [0, 0, 1, 1], [], []>} : vector<2x32xf32>, vector<32x128xf32>, vector<2x128xf32> -> vector<2x128xf32>
    %49 = arith.addf %47, %48 : vector<2x128xf32>
    %50 = arith.negf %49 : vector<2x128xf32>
    %51 = math.exp %50 : vector<2x128xf32>
    %cst_17 = arith.constant 1.000000e+00 : f32
    %52 = vector.broadcast %cst_17 : f32 to vector<2x128xf32>
    %53 = arith.addf %52, %51 : vector<2x128xf32>
    %54 = arith.divf %52, %53 : vector<2x128xf32>
    %55 = math.tanh %49 : vector<2x128xf32>
    %56 = vector.extract_strided_slice %54 {offsets = [0, 0], sizes = [2, 32], strides = [1, 1]} : vector<2x128xf32> to vector<2x32xf32>
    %57 = vector.extract_strided_slice %54 {offsets = [0, 32], sizes = [2, 32], strides = [1, 1]} : vector<2x128xf32> to vector<2x32xf32>
    %58 = vector.extract_strided_slice %55 {offsets = [0, 64], sizes = [2, 32], strides = [1, 1]} : vector<2x128xf32> to vector<2x32xf32>
    %59 = vector.extract_strided_slice %54 {offsets = [0, 96], sizes = [2, 32], strides = [1, 1]} : vector<2x128xf32> to vector<2x32xf32>
    %60 = arith.mulf %57, %43 : vector<2x32xf32>
    %61 = arith.mulf %56, %58 : vector<2x32xf32>
    %62 = arith.addf %60, %61 : vector<2x32xf32>
    %63 = math.tanh %62 : vector<2x32xf32>
    %64 = arith.mulf %59, %63 : vector<2x32xf32>
    %c4 = arith.constant 4 : index
    %c0_18 = arith.constant 0 : index
    %65 = vector.load %arg8[%c4, %c0_18] : memref<16x32xf32, #tpu.memory_space<vmem>>, vector<2x32xf32>
    tpu.vector_store %arg8[%c4, %c0_18], %64 {strides = array<i32>} : memref<16x32xf32, #tpu.memory_space<vmem>>, vector<2x32xf32>,
    %66 = vector.extract_strided_slice %6 {offsets = [6, 0], sizes = [2, 128], strides = [1, 1]} : vector<16x128xf32> to vector<2x128xf32>
    %cst_19 = arith.constant dense<0.000000e+00> : vector<2x128xf32>
    %67 = tpu.matmul %64, %2, %cst_19 {dimension_numbers = #tpu.dot_dimension_numbers<[1], [0], [0], [1], [0, 0, 1, 1], [], []>} : vector<2x32xf32>, vector<32x128xf32>, vector<2x128xf32> -> vector<2x128xf32>
    %68 = arith.addf %66, %67 : vector<2x128xf32>
    %69 = arith.negf %68 : vector<2x128xf32>
    %70 = math.exp %69 : vector<2x128xf32>
    %cst_20 = arith.constant 1.000000e+00 : f32
    %71 = vector.broadcast %cst_20 : f32 to vector<2x128xf32>
    %72 = arith.addf %71, %70 : vector<2x128xf32>
    %73 = arith.divf %71, %72 : vector<2x128xf32>
    %74 = math.tanh %68 : vector<2x128xf32>
    %75 = vector.extract_strided_slice %73 {offsets = [0, 0], sizes = [2, 32], strides = [1, 1]} : vector<2x128xf32> to vector<2x32xf32>
    %76 = vector.extract_strided_slice %73 {offsets = [0, 32], sizes = [2, 32], strides = [1, 1]} : vector<2x128xf32> to vector<2x32xf32>
    %77 = vector.extract_strided_slice %74 {offsets = [0, 64], sizes = [2, 32], strides = [1, 1]} : vector<2x128xf32> to vector<2x32xf32>
    %78 = vector.extract_strided_slice %73 {offsets = [0, 96], sizes = [2, 32], strides = [1, 1]} : vector<2x128xf32> to vector<2x32xf32>
    %79 = arith.mulf %76, %62 : vector<2x32xf32>
    %80 = arith.mulf %75, %77 : vector<2x32xf32>
    %81 = arith.addf %79, %80 : vector<2x32xf32>
    %82 = math.tanh %81 : vector<2x32xf32>
    %83 = arith.mulf %78, %82 : vector<2x32xf32>
    %c6 = arith.constant 6 : index
    %c0_21 = arith.constant 0 : index
    %84 = vector.load %arg8[%c6, %c0_21] : memref<16x32xf32, #tpu.memory_space<vmem>>, vector<2x32xf32>
    tpu.vector_store %arg8[%c6, %c0_21], %83 {strides = array<i32>} : memref<16x32xf32, #tpu.memory_space<vmem>>, vector<2x32xf32>,
    %85 = vector.extract_strided_slice %6 {offsets = [8, 0], sizes = [2, 128], strides = [1, 1]} : vector<16x128xf32> to vector<2x128xf32>
    %cst_22 = arith.constant dense<0.000000e+00> : vector<2x128xf32>
    %86 = tpu.matmul %83, %2, %cst_22 {dimension_numbers = #tpu.dot_dimension_numbers<[1], [0], [0], [1], [0, 0, 1, 1], [], []>} : vector<2x32xf32>, vector<32x128xf32>, vector<2x128xf32> -> vector<2x128xf32>
    %87 = arith.addf %85, %86 : vector<2x128xf32>
    %88 = arith.negf %87 : vector<2x128xf32>
    %89 = math.exp %88 : vector<2x128xf32>
    %cst_23 = arith.constant 1.000000e+00 : f32
    %90 = vector.broadcast %cst_23 : f32 to vector<2x128xf32>
    %91 = arith.addf %90, %89 : vector<2x128xf32>
    %92 = arith.divf %90, %91 : vector<2x128xf32>
    %93 = math.tanh %87 : vector<2x128xf32>
    %94 = vector.extract_strided_slice %92 {offsets = [0, 0], sizes = [2, 32], strides = [1, 1]} : vector<2x128xf32> to vector<2x32xf32>
    %95 = vector.extract_strided_slice %92 {offsets = [0, 32], sizes = [2, 32], strides = [1, 1]} : vector<2x128xf32> to vector<2x32xf32>
    %96 = vector.extract_strided_slice %93 {offsets = [0, 64], sizes = [2, 32], strides = [1, 1]} : vector<2x128xf32> to vector<2x32xf32>
    %97 = vector.extract_strided_slice %92 {offsets = [0, 96], sizes = [2, 32], strides = [1, 1]} : vector<2x128xf32> to vector<2x32xf32>
    %98 = arith.mulf %95, %81 : vector<2x32xf32>
    %99 = arith.mulf %94, %96 : vector<2x32xf32>
    %100 = arith.addf %98, %99 : vector<2x32xf32>
    %101 = math.tanh %100 : vector<2x32xf32>
    %102 = arith.mulf %97, %101 : vector<2x32xf32>
    %c8 = arith.constant 8 : index
    %c0_24 = arith.constant 0 : index
    %103 = vector.load %arg8[%c8, %c0_24] : memref<16x32xf32, #tpu.memory_space<vmem>>, vector<2x32xf32>
    tpu.vector_store %arg8[%c8, %c0_24], %102 {strides = array<i32>} : memref<16x32xf32, #tpu.memory_space<vmem>>, vector<2x32xf32>,
    %104 = vector.extract_strided_slice %6 {offsets = [10, 0], sizes = [2, 128], strides = [1, 1]} : vector<16x128xf32> to vector<2x128xf32>
    %cst_25 = arith.constant dense<0.000000e+00> : vector<2x128xf32>
    %105 = tpu.matmul %102, %2, %cst_25 {dimension_numbers = #tpu.dot_dimension_numbers<[1], [0], [0], [1], [0, 0, 1, 1], [], []>} : vector<2x32xf32>, vector<32x128xf32>, vector<2x128xf32> -> vector<2x128xf32>
    %106 = arith.addf %104, %105 : vector<2x128xf32>
    %107 = arith.negf %106 : vector<2x128xf32>
    %108 = math.exp %107 : vector<2x128xf32>
    %cst_26 = arith.constant 1.000000e+00 : f32
    %109 = vector.broadcast %cst_26 : f32 to vector<2x128xf32>
    %110 = arith.addf %109, %108 : vector<2x128xf32>
    %111 = arith.divf %109, %110 : vector<2x128xf32>
    %112 = math.tanh %106 : vector<2x128xf32>
    %113 = vector.extract_strided_slice %111 {offsets = [0, 0], sizes = [2, 32], strides = [1, 1]} : vector<2x128xf32> to vector<2x32xf32>
    %114 = vector.extract_strided_slice %111 {offsets = [0, 32], sizes = [2, 32], strides = [1, 1]} : vector<2x128xf32> to vector<2x32xf32>
    %115 = vector.extract_strided_slice %112 {offsets = [0, 64], sizes = [2, 32], strides = [1, 1]} : vector<2x128xf32> to vector<2x32xf32>
    %116 = vector.extract_strided_slice %111 {offsets = [0, 96], sizes = [2, 32], strides = [1, 1]} : vector<2x128xf32> to vector<2x32xf32>
    %117 = arith.mulf %114, %100 : vector<2x32xf32>
    %118 = arith.mulf %113, %115 : vector<2x32xf32>
    %119 = arith.addf %117, %118 : vector<2x32xf32>
    %120 = math.tanh %119 : vector<2x32xf32>
    %121 = arith.mulf %116, %120 : vector<2x32xf32>
    %c10 = arith.constant 10 : index
    %c0_27 = arith.constant 0 : index
    %122 = vector.load %arg8[%c10, %c0_27] : memref<16x32xf32, #tpu.memory_space<vmem>>, vector<2x32xf32>
    tpu.vector_store %arg8[%c10, %c0_27], %121 {strides = array<i32>} : memref<16x32xf32, #tpu.memory_space<vmem>>, vector<2x32xf32>,
    %123 = vector.extract_strided_slice %6 {offsets = [12, 0], sizes = [2, 128], strides = [1, 1]} : vector<16x128xf32> to vector<2x128xf32>
    %cst_28 = arith.constant dense<0.000000e+00> : vector<2x128xf32>
    %124 = tpu.matmul %121, %2, %cst_28 {dimension_numbers = #tpu.dot_dimension_numbers<[1], [0], [0], [1], [0, 0, 1, 1], [], []>} : vector<2x32xf32>, vector<32x128xf32>, vector<2x128xf32> -> vector<2x128xf32>
    %125 = arith.addf %123, %124 : vector<2x128xf32>
    %126 = arith.negf %125 : vector<2x128xf32>
    %127 = math.exp %126 : vector<2x128xf32>
    %cst_29 = arith.constant 1.000000e+00 : f32
    %128 = vector.broadcast %cst_29 : f32 to vector<2x128xf32>
    %129 = arith.addf %128, %127 : vector<2x128xf32>
    %130 = arith.divf %128, %129 : vector<2x128xf32>
    %131 = math.tanh %125 : vector<2x128xf32>
    %132 = vector.extract_strided_slice %130 {offsets = [0, 0], sizes = [2, 32], strides = [1, 1]} : vector<2x128xf32> to vector<2x32xf32>
    %133 = vector.extract_strided_slice %130 {offsets = [0, 32], sizes = [2, 32], strides = [1, 1]} : vector<2x128xf32> to vector<2x32xf32>
    %134 = vector.extract_strided_slice %131 {offsets = [0, 64], sizes = [2, 32], strides = [1, 1]} : vector<2x128xf32> to vector<2x32xf32>
    %135 = vector.extract_strided_slice %130 {offsets = [0, 96], sizes = [2, 32], strides = [1, 1]} : vector<2x128xf32> to vector<2x32xf32>
    %136 = arith.mulf %133, %119 : vector<2x32xf32>
    %137 = arith.mulf %132, %134 : vector<2x32xf32>
    %138 = arith.addf %136, %137 : vector<2x32xf32>
    %139 = math.tanh %138 : vector<2x32xf32>
    %140 = arith.mulf %135, %139 : vector<2x32xf32>
    %c12 = arith.constant 12 : index
    %c0_30 = arith.constant 0 : index
    %141 = vector.load %arg8[%c12, %c0_30] : memref<16x32xf32, #tpu.memory_space<vmem>>, vector<2x32xf32>
    tpu.vector_store %arg8[%c12, %c0_30], %140 {strides = array<i32>} : memref<16x32xf32, #tpu.memory_space<vmem>>, vector<2x32xf32>,
    %142 = vector.extract_strided_slice %6 {offsets = [14, 0], sizes = [2, 128], strides = [1, 1]} : vector<16x128xf32> to vector<2x128xf32>
    %cst_31 = arith.constant dense<0.000000e+00> : vector<2x128xf32>
    %143 = tpu.matmul %140, %2, %cst_31 {dimension_numbers = #tpu.dot_dimension_numbers<[1], [0], [0], [1], [0, 0, 1, 1], [], []>} : vector<2x32xf32>, vector<32x128xf32>, vector<2x128xf32> -> vector<2x128xf32>
    %144 = arith.addf %142, %143 : vector<2x128xf32>
    %145 = arith.negf %144 : vector<2x128xf32>
    %146 = math.exp %145 : vector<2x128xf32>
    %cst_32 = arith.constant 1.000000e+00 : f32
    %147 = vector.broadcast %cst_32 : f32 to vector<2x128xf32>
    %148 = arith.addf %147, %146 : vector<2x128xf32>
    %149 = arith.divf %147, %148 : vector<2x128xf32>
    %150 = math.tanh %144 : vector<2x128xf32>
    %151 = vector.extract_strided_slice %149 {offsets = [0, 0], sizes = [2, 32], strides = [1, 1]} : vector<2x128xf32> to vector<2x32xf32>
    %152 = vector.extract_strided_slice %149 {offsets = [0, 32], sizes = [2, 32], strides = [1, 1]} : vector<2x128xf32> to vector<2x32xf32>
    %153 = vector.extract_strided_slice %150 {offsets = [0, 64], sizes = [2, 32], strides = [1, 1]} : vector<2x128xf32> to vector<2x32xf32>
    %154 = vector.extract_strided_slice %149 {offsets = [0, 96], sizes = [2, 32], strides = [1, 1]} : vector<2x128xf32> to vector<2x32xf32>
    %155 = arith.mulf %152, %138 : vector<2x32xf32>
    %156 = arith.mulf %151, %153 : vector<2x32xf32>
    %157 = arith.addf %155, %156 : vector<2x32xf32>
    %158 = math.tanh %157 : vector<2x32xf32>
    %159 = arith.mulf %154, %158 : vector<2x32xf32>
    %c14 = arith.constant 14 : index
    %c0_33 = arith.constant 0 : index
    %160 = vector.load %arg8[%c14, %c0_33] : memref<16x32xf32, #tpu.memory_space<vmem>>, vector<2x32xf32>
    tpu.vector_store %arg8[%c14, %c0_33], %159 {strides = array<i32>} : memref<16x32xf32, #tpu.memory_space<vmem>>, vector<2x32xf32>,
    %c0_34 = arith.constant 0 : index
    %c0_35 = arith.constant 0 : index
    %161 = vector.load %arg8[%c0_34, %c0_35] : memref<16x32xf32, #tpu.memory_space<vmem>>, vector<16x32xf32>
    %c0_36 = arith.constant 0 : index
    %c0_37 = arith.constant 0 : index
    %162 = vector.load %arg4[%c0_36, %c0_37] : memref<32x128xf32, #tpu.memory_space<vmem>>, vector<32x128xf32>
    %c0_38 = arith.constant 0 : index
    %c0_39 = arith.constant 0 : index
    %163 = vector.load %arg5[%c0_38, %c0_39] : memref<32x128xf32, #tpu.memory_space<vmem>>, vector<32x128xf32>
    %c0_40 = arith.constant 0 : index
    %c0_41 = arith.constant 0 : index
    %164 = vector.load %arg6[%c0_40, %c0_41] : memref<1x128xf32, #tpu.memory_space<vmem>>, vector<1x128xf32>
    %cst_42 = arith.constant dense<0.000000e+00> : vector<16x128xf32>
    %165 = tpu.matmul %161, %162, %cst_42 {dimension_numbers = #tpu.dot_dimension_numbers<[1], [0], [0], [1], [0, 0, 1, 1], [], []>} : vector<16x32xf32>, vector<32x128xf32>, vector<16x128xf32> -> vector<16x128xf32>
    %166 = vector.broadcast %164 : vector<1x128xf32> to vector<16x128xf32>
    %167 = arith.addf %165, %166 : vector<16x128xf32>
    %cst_43 = arith.constant 0.000000e+00 : f32
    %168 = vector.broadcast %cst_43 : f32 to vector<2x32xf32>
    %cst_44 = arith.constant 0.000000e+00 : f32
    %169 = vector.broadcast %cst_44 : f32 to vector<2x32xf32>
    %170 = vector.extract_strided_slice %167 {offsets = [0, 0], sizes = [2, 128], strides = [1, 1]} : vector<16x128xf32> to vector<2x128xf32>
    %cst_45 = arith.constant dense<0.000000e+00> : vector<2x128xf32>
    %171 = tpu.matmul %168, %163, %cst_45 {dimension_numbers = #tpu.dot_dimension_numbers<[1], [0], [0], [1], [0, 0, 1, 1], [], []>} : vector<2x32xf32>, vector<32x128xf32>, vector<2x128xf32> -> vector<2x128xf32>
    %172 = arith.addf %170, %171 : vector<2x128xf32>
    %173 = arith.negf %172 : vector<2x128xf32>
    %174 = math.exp %173 : vector<2x128xf32>
    %cst_46 = arith.constant 1.000000e+00 : f32
    %175 = vector.broadcast %cst_46 : f32 to vector<2x128xf32>
    %176 = arith.addf %175, %174 : vector<2x128xf32>
    %177 = arith.divf %175, %176 : vector<2x128xf32>
    %178 = math.tanh %172 : vector<2x128xf32>
    %179 = vector.extract_strided_slice %177 {offsets = [0, 0], sizes = [2, 32], strides = [1, 1]} : vector<2x128xf32> to vector<2x32xf32>
    %180 = vector.extract_strided_slice %177 {offsets = [0, 32], sizes = [2, 32], strides = [1, 1]} : vector<2x128xf32> to vector<2x32xf32>
    %181 = vector.extract_strided_slice %178 {offsets = [0, 64], sizes = [2, 32], strides = [1, 1]} : vector<2x128xf32> to vector<2x32xf32>
    %182 = vector.extract_strided_slice %177 {offsets = [0, 96], sizes = [2, 32], strides = [1, 1]} : vector<2x128xf32> to vector<2x32xf32>
    %183 = arith.mulf %180, %169 : vector<2x32xf32>
    %184 = arith.mulf %179, %181 : vector<2x32xf32>
    %185 = arith.addf %183, %184 : vector<2x32xf32>
    %186 = math.tanh %185 : vector<2x32xf32>
    %187 = arith.mulf %182, %186 : vector<2x32xf32>
    %188 = vector.extract_strided_slice %167 {offsets = [2, 0], sizes = [2, 128], strides = [1, 1]} : vector<16x128xf32> to vector<2x128xf32>
    %cst_47 = arith.constant dense<0.000000e+00> : vector<2x128xf32>
    %189 = tpu.matmul %187, %163, %cst_47 {dimension_numbers = #tpu.dot_dimension_numbers<[1], [0], [0], [1], [0, 0, 1, 1], [], []>} : vector<2x32xf32>, vector<32x128xf32>, vector<2x128xf32> -> vector<2x128xf32>
    %190 = arith.addf %188, %189 : vector<2x128xf32>
    %191 = arith.negf %190 : vector<2x128xf32>
    %192 = math.exp %191 : vector<2x128xf32>
    %cst_48 = arith.constant 1.000000e+00 : f32
    %193 = vector.broadcast %cst_48 : f32 to vector<2x128xf32>
    %194 = arith.addf %193, %192 : vector<2x128xf32>
    %195 = arith.divf %193, %194 : vector<2x128xf32>
    %196 = math.tanh %190 : vector<2x128xf32>
    %197 = vector.extract_strided_slice %195 {offsets = [0, 0], sizes = [2, 32], strides = [1, 1]} : vector<2x128xf32> to vector<2x32xf32>
    %198 = vector.extract_strided_slice %195 {offsets = [0, 32], sizes = [2, 32], strides = [1, 1]} : vector<2x128xf32> to vector<2x32xf32>
    %199 = vector.extract_strided_slice %196 {offsets = [0, 64], sizes = [2, 32], strides = [1, 1]} : vector<2x128xf32> to vector<2x32xf32>
    %200 = vector.extract_strided_slice %195 {offsets = [0, 96], sizes = [2, 32], strides = [1, 1]} : vector<2x128xf32> to vector<2x32xf32>
    %201 = arith.mulf %198, %185 : vector<2x32xf32>
    %202 = arith.mulf %197, %199 : vector<2x32xf32>
    %203 = arith.addf %201, %202 : vector<2x32xf32>
    %204 = math.tanh %203 : vector<2x32xf32>
    %205 = arith.mulf %200, %204 : vector<2x32xf32>
    %206 = vector.extract_strided_slice %167 {offsets = [4, 0], sizes = [2, 128], strides = [1, 1]} : vector<16x128xf32> to vector<2x128xf32>
    %cst_49 = arith.constant dense<0.000000e+00> : vector<2x128xf32>
    %207 = tpu.matmul %205, %163, %cst_49 {dimension_numbers = #tpu.dot_dimension_numbers<[1], [0], [0], [1], [0, 0, 1, 1], [], []>} : vector<2x32xf32>, vector<32x128xf32>, vector<2x128xf32> -> vector<2x128xf32>
    %208 = arith.addf %206, %207 : vector<2x128xf32>
    %209 = arith.negf %208 : vector<2x128xf32>
    %210 = math.exp %209 : vector<2x128xf32>
    %cst_50 = arith.constant 1.000000e+00 : f32
    %211 = vector.broadcast %cst_50 : f32 to vector<2x128xf32>
    %212 = arith.addf %211, %210 : vector<2x128xf32>
    %213 = arith.divf %211, %212 : vector<2x128xf32>
    %214 = math.tanh %208 : vector<2x128xf32>
    %215 = vector.extract_strided_slice %213 {offsets = [0, 0], sizes = [2, 32], strides = [1, 1]} : vector<2x128xf32> to vector<2x32xf32>
    %216 = vector.extract_strided_slice %213 {offsets = [0, 32], sizes = [2, 32], strides = [1, 1]} : vector<2x128xf32> to vector<2x32xf32>
    %217 = vector.extract_strided_slice %214 {offsets = [0, 64], sizes = [2, 32], strides = [1, 1]} : vector<2x128xf32> to vector<2x32xf32>
    %218 = vector.extract_strided_slice %213 {offsets = [0, 96], sizes = [2, 32], strides = [1, 1]} : vector<2x128xf32> to vector<2x32xf32>
    %219 = arith.mulf %216, %203 : vector<2x32xf32>
    %220 = arith.mulf %215, %217 : vector<2x32xf32>
    %221 = arith.addf %219, %220 : vector<2x32xf32>
    %222 = math.tanh %221 : vector<2x32xf32>
    %223 = arith.mulf %218, %222 : vector<2x32xf32>
    %224 = vector.extract_strided_slice %167 {offsets = [6, 0], sizes = [2, 128], strides = [1, 1]} : vector<16x128xf32> to vector<2x128xf32>
    %cst_51 = arith.constant dense<0.000000e+00> : vector<2x128xf32>
    %225 = tpu.matmul %223, %163, %cst_51 {dimension_numbers = #tpu.dot_dimension_numbers<[1], [0], [0], [1], [0, 0, 1, 1], [], []>} : vector<2x32xf32>, vector<32x128xf32>, vector<2x128xf32> -> vector<2x128xf32>
    %226 = arith.addf %224, %225 : vector<2x128xf32>
    %227 = arith.negf %226 : vector<2x128xf32>
    %228 = math.exp %227 : vector<2x128xf32>
    %cst_52 = arith.constant 1.000000e+00 : f32
    %229 = vector.broadcast %cst_52 : f32 to vector<2x128xf32>
    %230 = arith.addf %229, %228 : vector<2x128xf32>
    %231 = arith.divf %229, %230 : vector<2x128xf32>
    %232 = math.tanh %226 : vector<2x128xf32>
    %233 = vector.extract_strided_slice %231 {offsets = [0, 0], sizes = [2, 32], strides = [1, 1]} : vector<2x128xf32> to vector<2x32xf32>
    %234 = vector.extract_strided_slice %231 {offsets = [0, 32], sizes = [2, 32], strides = [1, 1]} : vector<2x128xf32> to vector<2x32xf32>
    %235 = vector.extract_strided_slice %232 {offsets = [0, 64], sizes = [2, 32], strides = [1, 1]} : vector<2x128xf32> to vector<2x32xf32>
    %236 = vector.extract_strided_slice %231 {offsets = [0, 96], sizes = [2, 32], strides = [1, 1]} : vector<2x128xf32> to vector<2x32xf32>
    %237 = arith.mulf %234, %221 : vector<2x32xf32>
    %238 = arith.mulf %233, %235 : vector<2x32xf32>
    %239 = arith.addf %237, %238 : vector<2x32xf32>
    %240 = math.tanh %239 : vector<2x32xf32>
    %241 = arith.mulf %236, %240 : vector<2x32xf32>
    %242 = vector.extract_strided_slice %167 {offsets = [8, 0], sizes = [2, 128], strides = [1, 1]} : vector<16x128xf32> to vector<2x128xf32>
    %cst_53 = arith.constant dense<0.000000e+00> : vector<2x128xf32>
    %243 = tpu.matmul %241, %163, %cst_53 {dimension_numbers = #tpu.dot_dimension_numbers<[1], [0], [0], [1], [0, 0, 1, 1], [], []>} : vector<2x32xf32>, vector<32x128xf32>, vector<2x128xf32> -> vector<2x128xf32>
    %244 = arith.addf %242, %243 : vector<2x128xf32>
    %245 = arith.negf %244 : vector<2x128xf32>
    %246 = math.exp %245 : vector<2x128xf32>
    %cst_54 = arith.constant 1.000000e+00 : f32
    %247 = vector.broadcast %cst_54 : f32 to vector<2x128xf32>
    %248 = arith.addf %247, %246 : vector<2x128xf32>
    %249 = arith.divf %247, %248 : vector<2x128xf32>
    %250 = math.tanh %244 : vector<2x128xf32>
    %251 = vector.extract_strided_slice %249 {offsets = [0, 0], sizes = [2, 32], strides = [1, 1]} : vector<2x128xf32> to vector<2x32xf32>
    %252 = vector.extract_strided_slice %249 {offsets = [0, 32], sizes = [2, 32], strides = [1, 1]} : vector<2x128xf32> to vector<2x32xf32>
    %253 = vector.extract_strided_slice %250 {offsets = [0, 64], sizes = [2, 32], strides = [1, 1]} : vector<2x128xf32> to vector<2x32xf32>
    %254 = vector.extract_strided_slice %249 {offsets = [0, 96], sizes = [2, 32], strides = [1, 1]} : vector<2x128xf32> to vector<2x32xf32>
    %255 = arith.mulf %252, %239 : vector<2x32xf32>
    %256 = arith.mulf %251, %253 : vector<2x32xf32>
    %257 = arith.addf %255, %256 : vector<2x32xf32>
    %258 = math.tanh %257 : vector<2x32xf32>
    %259 = arith.mulf %254, %258 : vector<2x32xf32>
    %260 = vector.extract_strided_slice %167 {offsets = [10, 0], sizes = [2, 128], strides = [1, 1]} : vector<16x128xf32> to vector<2x128xf32>
    %cst_55 = arith.constant dense<0.000000e+00> : vector<2x128xf32>
    %261 = tpu.matmul %259, %163, %cst_55 {dimension_numbers = #tpu.dot_dimension_numbers<[1], [0], [0], [1], [0, 0, 1, 1], [], []>} : vector<2x32xf32>, vector<32x128xf32>, vector<2x128xf32> -> vector<2x128xf32>
    %262 = arith.addf %260, %261 : vector<2x128xf32>
    %263 = arith.negf %262 : vector<2x128xf32>
    %264 = math.exp %263 : vector<2x128xf32>
    %cst_56 = arith.constant 1.000000e+00 : f32
    %265 = vector.broadcast %cst_56 : f32 to vector<2x128xf32>
    %266 = arith.addf %265, %264 : vector<2x128xf32>
    %267 = arith.divf %265, %266 : vector<2x128xf32>
    %268 = math.tanh %262 : vector<2x128xf32>
    %269 = vector.extract_strided_slice %267 {offsets = [0, 0], sizes = [2, 32], strides = [1, 1]} : vector<2x128xf32> to vector<2x32xf32>
    %270 = vector.extract_strided_slice %267 {offsets = [0, 32], sizes = [2, 32], strides = [1, 1]} : vector<2x128xf32> to vector<2x32xf32>
    %271 = vector.extract_strided_slice %268 {offsets = [0, 64], sizes = [2, 32], strides = [1, 1]} : vector<2x128xf32> to vector<2x32xf32>
    %272 = vector.extract_strided_slice %267 {offsets = [0, 96], sizes = [2, 32], strides = [1, 1]} : vector<2x128xf32> to vector<2x32xf32>
    %273 = arith.mulf %270, %257 : vector<2x32xf32>
    %274 = arith.mulf %269, %271 : vector<2x32xf32>
    %275 = arith.addf %273, %274 : vector<2x32xf32>
    %276 = math.tanh %275 : vector<2x32xf32>
    %277 = arith.mulf %272, %276 : vector<2x32xf32>
    %278 = vector.extract_strided_slice %167 {offsets = [12, 0], sizes = [2, 128], strides = [1, 1]} : vector<16x128xf32> to vector<2x128xf32>
    %cst_57 = arith.constant dense<0.000000e+00> : vector<2x128xf32>
    %279 = tpu.matmul %277, %163, %cst_57 {dimension_numbers = #tpu.dot_dimension_numbers<[1], [0], [0], [1], [0, 0, 1, 1], [], []>} : vector<2x32xf32>, vector<32x128xf32>, vector<2x128xf32> -> vector<2x128xf32>
    %280 = arith.addf %278, %279 : vector<2x128xf32>
    %281 = arith.negf %280 : vector<2x128xf32>
    %282 = math.exp %281 : vector<2x128xf32>
    %cst_58 = arith.constant 1.000000e+00 : f32
    %283 = vector.broadcast %cst_58 : f32 to vector<2x128xf32>
    %284 = arith.addf %283, %282 : vector<2x128xf32>
    %285 = arith.divf %283, %284 : vector<2x128xf32>
    %286 = math.tanh %280 : vector<2x128xf32>
    %287 = vector.extract_strided_slice %285 {offsets = [0, 0], sizes = [2, 32], strides = [1, 1]} : vector<2x128xf32> to vector<2x32xf32>
    %288 = vector.extract_strided_slice %285 {offsets = [0, 32], sizes = [2, 32], strides = [1, 1]} : vector<2x128xf32> to vector<2x32xf32>
    %289 = vector.extract_strided_slice %286 {offsets = [0, 64], sizes = [2, 32], strides = [1, 1]} : vector<2x128xf32> to vector<2x32xf32>
    %290 = vector.extract_strided_slice %285 {offsets = [0, 96], sizes = [2, 32], strides = [1, 1]} : vector<2x128xf32> to vector<2x32xf32>
    %291 = arith.mulf %288, %275 : vector<2x32xf32>
    %292 = arith.mulf %287, %289 : vector<2x32xf32>
    %293 = arith.addf %291, %292 : vector<2x32xf32>
    %294 = math.tanh %293 : vector<2x32xf32>
    %295 = arith.mulf %290, %294 : vector<2x32xf32>
    %296 = vector.extract_strided_slice %167 {offsets = [14, 0], sizes = [2, 128], strides = [1, 1]} : vector<16x128xf32> to vector<2x128xf32>
    %cst_59 = arith.constant dense<0.000000e+00> : vector<2x128xf32>
    %297 = tpu.matmul %295, %163, %cst_59 {dimension_numbers = #tpu.dot_dimension_numbers<[1], [0], [0], [1], [0, 0, 1, 1], [], []>} : vector<2x32xf32>, vector<32x128xf32>, vector<2x128xf32> -> vector<2x128xf32>
    %298 = arith.addf %296, %297 : vector<2x128xf32>
    %299 = arith.negf %298 : vector<2x128xf32>
    %300 = math.exp %299 : vector<2x128xf32>
    %cst_60 = arith.constant 1.000000e+00 : f32
    %301 = vector.broadcast %cst_60 : f32 to vector<2x128xf32>
    %302 = arith.addf %301, %300 : vector<2x128xf32>
    %303 = arith.divf %301, %302 : vector<2x128xf32>
    %304 = math.tanh %298 : vector<2x128xf32>
    %305 = vector.extract_strided_slice %303 {offsets = [0, 0], sizes = [2, 32], strides = [1, 1]} : vector<2x128xf32> to vector<2x32xf32>
    %306 = vector.extract_strided_slice %303 {offsets = [0, 32], sizes = [2, 32], strides = [1, 1]} : vector<2x128xf32> to vector<2x32xf32>
    %307 = vector.extract_strided_slice %304 {offsets = [0, 64], sizes = [2, 32], strides = [1, 1]} : vector<2x128xf32> to vector<2x32xf32>
    %308 = vector.extract_strided_slice %303 {offsets = [0, 96], sizes = [2, 32], strides = [1, 1]} : vector<2x128xf32> to vector<2x32xf32>
    %309 = arith.mulf %306, %293 : vector<2x32xf32>
    %310 = arith.mulf %305, %307 : vector<2x32xf32>
    %311 = arith.addf %309, %310 : vector<2x32xf32>
    %312 = math.tanh %311 : vector<2x32xf32>
    %313 = arith.mulf %308, %312 : vector<2x32xf32>
    %c0_61 = arith.constant 0 : index
    %c0_62 = arith.constant 0 : index
    %314 = vector.load %arg7[%c0_61, %c0_62] : memref<2x32xf32, #tpu.memory_space<vmem>>, vector<2x32xf32>
    tpu.vector_store %arg7[%c0_61, %c0_62], %313 {strides = array<i32>} : memref<2x32xf32, #tpu.memory_space<vmem>>, vector<2x32xf32>,
    return
  }
}

</mosaic_0001>

<llo_original>
// kernel: lstm_forward.1
$region0: #{lstm_forward.1}
  #allocation0 [shape = 'u32[]', space=smem, size = 0x4, offset = 0x4, fixed_abs, tag = 'smem constant byte address 0x4 - core index']
  #allocation1 [shape = 'u32[72,128]{1,0:T(1,128)}', space=vmem, size = 0x9000, scoped, tag = 'internal scratch']
  #allocation2 [shape = 'f32[16,32]{1,0:T(8,128)}', space=vmem, size = 0x2000, scoped, tag = 'scratch operand']
  %s0 = inlined_call_operand.vmem [shape: f32[16,4], index: 0, kind: input, shape index: {}]
  %s1 = inlined_call_operand.vmem [shape: f32[4,128], index: 1, kind: input, shape index: {}]
  %s2 = inlined_call_operand.hbm [shape: f32[32,128], index: 2, kind: input, shape index: {}]
  %s3 = inlined_call_operand.vmem [shape: f32[1,128], index: 3, kind: input, shape index: {}]
  %s4 = inlined_call_operand.hbm [shape: f32[32,128], index: 4, kind: input, shape index: {}]
  %s5 = inlined_call_operand.hbm [shape: f32[32,128], index: 5, kind: input, shape index: {}]
  %s6 = inlined_call_operand.vmem [shape: f32[1,128], index: 6, kind: input, shape index: {}]
  %s7 = inlined_call_operand.vmem [shape: f32[2,32], index: 7, kind: output, shape index: {}]
  %s8 = sld [smem:[#allocation0]]
  $region50: #{lstm_forward.1} parent=0
    _
  %s10 = ssub.s32 1, %s8
  %s11 = scalar_select 0, %s10, %s8
  $region1: #{lstm_forward.1} parent=0
    #allocation3 [shape = 'u8[16384]{0}', space=vmem, size = 0x4000, scoped, tag = 'input window, operand 2, single buffered']
    #allocation4 [shape = 's32[1]{0}', space=sflag, size = 0x4, scoped, tag = 'scoped memory for lstm_forward.1']
    #allocation5 [shape = 'u8[16384]{0}', space=vmem, size = 0x4000, scoped, tag = 'input window, operand 4, single buffered']
    #allocation6 [shape = 's32[1]{0}', space=sflag, size = 0x4, scoped, tag = 'scoped memory for lstm_forward.1']
    #allocation7 [shape = 'u8[16384]{0}', space=vmem, size = 0x4000, scoped, tag = 'input window, operand 5, single buffered']
    %12 = vsyncpa [#allocation4], 0
    %13 = vsyncpa [#allocation6], 0
    // Predicated region
    $region2: #{lstm_forward.1} parent=1 // pred_check
      _
    $region3: #{lstm_forward.1} parent=1 // pred_check_branch
      %15 = sbr.rel (0) target = $region5
    $region4: #{lstm_forward.1} parent=1 // pred_region
      _
    $region5: #{lstm_forward.1} parent=1 // pred_fallthru
      _
    // Predicated region
    $region6: #{lstm_forward.1} parent=1 // pred_check
      _
    $region7: #{lstm_forward.1} parent=1 // pred_check_branch
      %17 = sbr.rel (0) target = $region9
    $region8: #{lstm_forward.1} parent=1 // pred_region
      _
    $region9: #{lstm_forward.1} parent=1 // pred_fallthru
      _
    // Predicated region
    $region10: #{lstm_forward.1} parent=1 // pred_check
      _
    $region11: #{lstm_forward.1} parent=1 // pred_check_branch
      %19 = sbr.rel (0) target = $region13
    $region12: #{lstm_forward.1} parent=1 // pred_region
      %21 = vsyncadd [#allocation4], 0
      %s22 = sshll.u32 %s2, 4
      %s23 = int_to_ptr.hbm [resolvable:$true] %s22
      %s24 = sshll.u32 [#allocation3], 4
      %s25 = int_to_ptr.vmem [resolvable:$true] %s24
      %30 = dma.hbm_to_vmem [thread:$0]  %s23, 512, %s25, [#allocation4], 128, 128, 8
    $region13: #{lstm_forward.1} parent=1 // pred_fallthru
      _
    // Predicated region
    $region14: #{lstm_forward.1} parent=1 // pred_check
      _
    $region15: #{lstm_forward.1} parent=1 // pred_check_branch
      %32 = sbr.rel (0) target = $region17
    $region16: #{lstm_forward.1} parent=1 // pred_region
      _
    $region17: #{lstm_forward.1} parent=1 // pred_fallthru
      _
    // Predicated region
    $region18: #{lstm_forward.1} parent=1 // pred_check
      _
    $region19: #{lstm_forward.1} parent=1 // pred_check_branch
      %34 = sbr.rel (0) target = $region21
    $region20: #{lstm_forward.1} parent=1 // pred_region
      %36 = vsyncadd [#allocation6], 0
      %s37 = sshll.u32 %s4, 4
      %s38 = int_to_ptr.hbm [resolvable:$true] %s37
      %s39 = sshll.u32 [#allocation5], 4
      %s40 = int_to_ptr.vmem [resolvable:$true] %s39
      %45 = dma.hbm_to_vmem [thread:$0]  %s38, 512, %s40, [#allocation6], 128, 128, 8
    $region21: #{lstm_forward.1} parent=1 // pred_fallthru
      _
    // Predicated region
    $region22: #{lstm_forward.1} parent=1 // pred_check
      _
    $region23: #{lstm_forward.1} parent=1 // pred_check_branch
      %47 = sbr.rel (0) target = $region25
    $region24: #{lstm_forward.1} parent=1 // pred_region
      %49 = vsyncadd [#allocation6], 0
      %s50 = sshll.u32 %s5, 4
      %s51 = int_to_ptr.hbm [resolvable:$true] %s50
      %s52 = sshll.u32 [#allocation7], 4
      %s53 = int_to_ptr.vmem [resolvable:$true] %s52
      %58 = dma.hbm_to_vmem [thread:$0]  %s51, 512, %s53, [#allocation6], 128, 128, 8
    $region25: #{lstm_forward.1} parent=1 // pred_fallthru
      _
    // Predicated region
    $region26: #{lstm_forward.1} parent=1 // pred_check
      _
    $region27: #{lstm_forward.1} parent=1 // pred_check_branch
      %60 = sbr.rel (0) target = $region29
    $region28: #{lstm_forward.1} parent=1 // pred_region
      _
    $region29: #{lstm_forward.1} parent=1 // pred_fallthru
      _
    // Predicated region
    $region30: #{lstm_forward.1} parent=1 // pred_check
      _
    $region31: #{lstm_forward.1} parent=1 // pred_check_branch
      %62 = sbr.rel (0) target = $region33
    $region32: #{lstm_forward.1} parent=1 // pred_region
      %64 = dma.done [#allocation4], 512
    $region33: #{lstm_forward.1} parent=1 // pred_fallthru
      _
    // Predicated region
    $region34: #{lstm_forward.1} parent=1 // pred_check
      _
    $region35: #{lstm_forward.1} parent=1 // pred_check_branch
      %66 = sbr.rel (0) target = $region37
    $region36: #{lstm_forward.1} parent=1 // pred_region
      %68 = dma.done [#allocation6], 512
    $region37: #{lstm_forward.1} parent=1 // pred_fallthru
      _
    // Predicated region
    $region38: #{lstm_forward.1} parent=1 // pred_check
      _
    $region39: #{lstm_forward.1} parent=1 // pred_check_branch
      %70 = sbr.rel (0) target = $region41
    $region40: #{lstm_forward.1} parent=1 // pred_region
      %72 = dma.done [#allocation6], 512
    $region41: #{lstm_forward.1} parent=1 // pred_fallthru
      _
    %v73 = vld [vmem:[%s0] sm:$0xff]
    %v74 = vld [vmem:[%s0 + $0x8] sm:$0xff]
    %v75 = vld [vmem:[%s1] sm:$0xf]
    %v76 = vld [vmem:[#allocation3] sm:$0xff]
    %v77 = vld [vmem:[#allocation3 + $0x8] sm:$0xff]
    %v78 = vld [vmem:[#allocation3 + $0x10] sm:$0xff]
    %v79 = vld [vmem:[#allocation3 + $0x18] sm:$0xff]
    %v80 = vld [vmem:[%s3] sm:$0x1]
    %v82 = vperm.slane %v80, 0
    %vm84 = vcmask 31744
    %v86 = vsel %vm84, %v73, 0
    %v89 = vsel %vm84, %v74, 0
    %vm91 = vcmask 1043456
    %v93 = vsel %vm91, %v75, 0
    %95 = vmatpush.msra.mxu0 0.0
    %96 = vmatpush.msra.mxu0 0.0
    %97 = vmatpush.msra.mxu0 0.0
    %98 = vmatpush.msra.mxu0 0.0
    %99 = vmatpush.msra.mxu0 0.0
    %100 = vmatpush.msra.mxu0 0.0
    %101 = vmatpush.msra.mxu0 0.0
    %102 = vmatpush.msra.mxu0 0.0
    %103 = vmatpush.msra.mxu0 0.0
    %104 = vmatpush.msra.mxu0 0.0
    %105 = vmatpush.msra.mxu0 0.0
    %106 = vmatpush.msra.mxu0 0.0
    %107 = vmatpush.msra.mxu0 0.0
    %108 = vmatpush.msra.mxu0 0.0
    %109 = vmatpush.msra.mxu0 0.0
    %110 = vmatpush.msra.mxu0 %v93
    %111 = vmatmul.f32.gmra.mxu0 %v86
    %v112 = vpop.f32.mrf.mxu0
    %v113 = vadd.f32 %v82, %v112
    %114 = vmatmul.f32.gmra.mxu0 %v89
    %v115 = vpop.f32.mrf.mxu0
    %v116 = vadd.f32 %v82, %v115
    %117 = vdwg.mxu0
    %vm118 = vcmask 261120
    %v120 = vsel %vm118, 0.0, 0
    %122 = vmatpush.msra.mxu0 0.0
    %123 = vmatpush.msra.mxu0 0.0
    %124 = vmatpush.msra.mxu0 0.0
    %125 = vmatpush.msra.mxu0 0.0
    %126 = vmatpush.msra.mxu0 0.0
    %127 = vmatpush.msra.mxu0 0.0
    %128 = vmatpush.msra.mxu0 0.0
    %129 = vmatpush.msra.mxu0 0.0
    %130 = vmatpush.msra.mxu0 0.0
    %131 = vmatpush.msra.mxu0 0.0
    %132 = vmatpush.msra.mxu0 0.0
    %133 = vmatpush.msra.mxu0 0.0
    %134 = vmatpush.msra.mxu0 %v79
    %135 = vmatpush.msra.mxu0 %v78
    %136 = vmatpush.msra.mxu0 %v77
    %137 = vmatpush.msra.mxu0 %v76
    %138 = vmatmul.f32.gmra.mxu0 %v120
    %v139 = vpop.f32.mrf.mxu0
    %v140 = vadd.f32 0.0, %v139
    %141 = vdwg.mxu0
    %v142 = vadd.f32 %v113, %v140
    %v143 = vxor.u32 %v142, 2147483648
    %v144 = vmul.f32 %v143, 1.442695
    %v145 = vpow.pop %v144
    %v146 = vadd.f32 %v145, 1.0
    %v147 = vrcp.pop %v146
    %v148 = vmul.f32 %v146, %v147
    %v149 = vsub.f32 1.0, %v148
    %v150 = vmul.f32 %v147, %v149
    %v151 = vadd.f32 %v147, %v150
    %vm152 = vweird.f32 %v146
    %vm153 = vweird.f32 %v147
    %vm154 = vmor %vm152, %vm153
    %v155 = vsel %vm154, %v147, %v151
    %v156 = vand.u32 2147483647, %v146
    %vm157 = vcmp.eq.f32.partialorder %v156, 8.507059e+37
    %v158 = vand.u32 %v146, 2147483648
    %v159 = vor.u32 1.1754944e-38, %v158
    %v160 = vsel %vm157, %v159, %v155
    %v161 = vmul.f32 1.0, %v160
    %v162 = vtanh.pop %v142
    %v163 = vmul.f32 %v161, 0.0
    %165 = vrot.lane.b32.xlu0 %v162, 64
    %v166 = vpop.permute.xlu0 %165
    %v168 = vmul.f32 %v161, %v166
    %170 = vrot.lane.b32.xlu0 %v168, 32
    %v171 = vpop.permute.xlu0 %170
    %v173 = vadd.f32 %v163, %v171
    %v174 = vtanh.pop %v173
    %176 = vrot.lane.b32.xlu0 %v174, 64
    %v177 = vpop.permute.xlu0 %176
    %v179 = vmul.f32 %v161, %v177
    %181 = vrot.lane.b32.xlu0 %v179, 32
    %v182 = vpop.permute.xlu0 %181
    %vm184 = vcmask 254976
    %185 = vst.msk [vmem:[#allocation2] sm:$0x3] %vm184, %v182
    %v186 = vsel %vm118, %v182, 0
    %188 = vmatpush.msra.mxu0 0.0
    %189 = vmatpush.msra.mxu0 0.0
    %190 = vmatpush.msra.mxu0 0.0
    %191 = vmatpush.msra.mxu0 0.0
    %192 = vmatpush.msra.mxu0 0.0
    %193 = vmatpush.msra.mxu0 0.0
    %194 = vmatpush.msra.mxu0 0.0
    %195 = vmatpush.msra.mxu0 0.0
    %196 = vmatpush.msra.mxu0 0.0
    %197 = vmatpush.msra.mxu0 0.0
    %198 = vmatpush.msra.mxu0 0.0
    %199 = vmatpush.msra.mxu0 0.0
    %200 = vmatpush.msra.mxu0 %v79
    %201 = vmatpush.msra.mxu0 %v78
    %202 = vmatpush.msra.mxu0 %v77
    %203 = vmatpush.msra.mxu0 %v76
    %204 = vmatmul.f32.gmra.mxu0 %v186
    %v205 = vpop.f32.mrf.mxu0
    %v206 = vadd.f32 0.0, %v205
    %207 = vdwg.mxu0
    %v209 = vrot.slane %v206, 6
    %v211 = vadd.f32 %v113, %v209
    %v212 = vxor.u32 %v211, 2147483648
    %v213 = vmul.f32 %v212, 1.442695
    %v214 = vpow.pop %v213
    %v215 = vadd.f32 %v214, 1.0
    %v216 = vrcp.pop %v215
    %v217 = vmul.f32 %v215, %v216
    %v218 = vsub.f32 1.0, %v217
    %v219 = vmul.f32 %v216, %v218
    %v220 = vadd.f32 %v216, %v219
    %vm221 = vweird.f32 %v215
    %vm222 = vweird.f32 %v216
    %vm223 = vmor %vm221, %vm222
    %v224 = vsel %vm223, %v216, %v220
    %v225 = vand.u32 2147483647, %v215
    %vm226 = vcmp.eq.f32.partialorder %v225, 8.507059e+37
    %v227 = vand.u32 %v215, 2147483648
    %v228 = vor.u32 1.1754944e-38, %v227
    %v229 = vsel %vm226, %v228, %v224
    %v230 = vmul.f32 1.0, %v229
    %v231 = vtanh.pop %v211
    %v233 = vrot.slane %v173, 6
    %v235 = vmul.f32 %v230, %v233
    %237 = vrot.lane.b32.xlu0 %v231, 64
    %v238 = vpop.permute.xlu0 %237
    %v240 = vmul.f32 %v230, %v238
    %242 = vrot.lane.b32.xlu0 %v240, 32
    %v243 = vpop.permute.xlu0 %242
    %v245 = vadd.f32 %v235, %v243
    %v246 = vtanh.pop %v245
    %248 = vrot.lane.b32.xlu0 %v246, 64
    %v249 = vpop.permute.xlu0 %248
    %v251 = vmul.f32 %v230, %v249
    %253 = vrot.lane.b32.xlu0 %v251, 32
    %v254 = vpop.permute.xlu0 %253
    %vm256 = vcmask 257026
    %257 = vst.msk [vmem:[#allocation2] sm:$0xc] %vm256, %v254
    %v258 = vrot.slane %v251, 2
    %259 = vrot.lane.b32.xlu0 %v258, 32
    %v260 = vpop.permute.xlu0 %259
    %v261 = vsel %vm118, %v260, 0
    %263 = vmatpush.msra.mxu0 0.0
    %264 = vmatpush.msra.mxu0 0.0
    %265 = vmatpush.msra.mxu0 0.0
    %266 = vmatpush.msra.mxu0 0.0
    %267 = vmatpush.msra.mxu0 0.0
    %268 = vmatpush.msra.mxu0 0.0
    %269 = vmatpush.msra.mxu0 0.0
    %270 = vmatpush.msra.mxu0 0.0
    %271 = vmatpush.msra.mxu0 0.0
    %272 = vmatpush.msra.mxu0 0.0
    %273 = vmatpush.msra.mxu0 0.0
    %274 = vmatpush.msra.mxu0 0.0
    %275 = vmatpush.msra.mxu0 %v79
    %276 = vmatpush.msra.mxu0 %v78
    %277 = vmatpush.msra.mxu0 %v77
    %278 = vmatpush.msra.mxu0 %v76
    %279 = vmatmul.f32.gmra.mxu0 %v261
    %v280 = vpop.f32.mrf.mxu0
    %v281 = vadd.f32 0.0, %v280
    %282 = vdwg.mxu0
    %v284 = vrot.slane %v281, 4
    %v286 = vadd.f32 %v113, %v284
    %v287 = vxor.u32 %v286, 2147483648
    %v288 = vmul.f32 %v287, 1.442695
    %v289 = vpow.pop %v288
    %v290 = vadd.f32 %v289, 1.0
    %v291 = vrcp.pop %v290
    %v292 = vmul.f32 %v290, %v291
    %v293 = vsub.f32 1.0, %v292
    %v294 = vmul.f32 %v291, %v293
    %v295 = vadd.f32 %v291, %v294
    %vm296 = vweird.f32 %v290
    %vm297 = vweird.f32 %v291
    %vm298 = vmor %vm296, %vm297
    %v299 = vsel %vm298, %v291, %v295
    %v300 = vand.u32 2147483647, %v290
    %vm301 = vcmp.eq.f32.partialorder %v300, 8.507059e+37
    %v302 = vand.u32 %v290, 2147483648
    %v303 = vor.u32 1.1754944e-38, %v302
    %v304 = vsel %vm301, %v303, %v299
    %v305 = vmul.f32 1.0, %v304
    %v306 = vtanh.pop %v286
    %v308 = vrot.slane %v245, 6
    %v310 = vmul.f32 %v305, %v308
    %312 = vrot.lane.b32.xlu0 %v306, 64
    %v313 = vpop.permute.xlu0 %312
    %v315 = vmul.f32 %v305, %v313
    %317 = vrot.lane.b32.xlu0 %v315, 32
    %v318 = vpop.permute.xlu0 %317
    %v320 = vadd.f32 %v310, %v318
    %v321 = vtanh.pop %v320
    %323 = vrot.lane.b32.xlu0 %v321, 64
    %v324 = vpop.permute.xlu0 %323
    %v326 = vmul.f32 %v305, %v324
    %328 = vrot.lane.b32.xlu0 %v326, 32
    %v329 = vpop.permute.xlu0 %328
    %vm331 = vcmask 259076
    %332 = vst.msk [vmem:[#allocation2] sm:$0x30] %vm331, %v329
    %v333 = vrot.slane %v326, 4
    %334 = vrot.lane.b32.xlu0 %v333, 32
    %v335 = vpop.permute.xlu0 %334
    %v336 = vsel %vm118, %v335, 0
    %338 = vmatpush.msra.mxu0 0.0
    %339 = vmatpush.msra.mxu0 0.0
    %340 = vmatpush.msra.mxu0 0.0
    %341 = vmatpush.msra.mxu0 0.0
    %342 = vmatpush.msra.mxu0 0.0
    %343 = vmatpush.msra.mxu0 0.0
    %344 = vmatpush.msra.mxu0 0.0
    %345 = vmatpush.msra.mxu0 0.0
    %346 = vmatpush.msra.mxu0 0.0
    %347 = vmatpush.msra.mxu0 0.0
    %348 = vmatpush.msra.mxu0 0.0
    %349 = vmatpush.msra.mxu0 0.0
    %350 = vmatpush.msra.mxu0 %v79
    %351 = vmatpush.msra.mxu0 %v78
    %352 = vmatpush.msra.mxu0 %v77
    %353 = vmatpush.msra.mxu0 %v76
    %354 = vmatmul.f32.gmra.mxu0 %v336
    %v355 = vpop.f32.mrf.mxu0
    %v356 = vadd.f32 0.0, %v355
    %357 = vdwg.mxu0
    %v359 = vrot.slane %v356, 2
    %v361 = vadd.f32 %v113, %v359
    %v362 = vxor.u32 %v361, 2147483648
    %v363 = vmul.f32 %v362, 1.442695
    %v364 = vpow.pop %v363
    %v365 = vadd.f32 %v364, 1.0
    %v366 = vrcp.pop %v365
    %v367 = vmul.f32 %v365, %v366
    %v368 = vsub.f32 1.0, %v367
    %v369 = vmul.f32 %v366, %v368
    %v370 = vadd.f32 %v366, %v369
    %vm371 = vweird.f32 %v365
    %vm372 = vweird.f32 %v366
    %vm373 = vmor %vm371, %vm372
    %v374 = vsel %vm373, %v366, %v370
    %v375 = vand.u32 2147483647, %v365
    %vm376 = vcmp.eq.f32.partialorder %v375, 8.507059e+37
    %v377 = vand.u32 %v365, 2147483648
    %v378 = vor.u32 1.1754944e-38, %v377
    %v379 = vsel %vm376, %v378, %v374
    %v380 = vmul.f32 1.0, %v379
    %v381 = vtanh.pop %v361
    %v383 = vrot.slane %v320, 6
    %v385 = vmul.f32 %v380, %v383
    %387 = vrot.lane.b32.xlu0 %v381, 64
    %v388 = vpop.permute.xlu0 %387
    %v390 = vmul.f32 %v380, %v388
    %392 = vrot.lane.b32.xlu0 %v390, 32
    %v393 = vpop.permute.xlu0 %392
    %v395 = vadd.f32 %v385, %v393
    %v396 = vtanh.pop %v395
    %398 = vrot.lane.b32.xlu0 %v396, 64
    %v399 = vpop.permute.xlu0 %398
    %v401 = vmul.f32 %v380, %v399
    %403 = vrot.lane.b32.xlu0 %v401, 32
    %v404 = vpop.permute.xlu0 %403
    %vm406 = vcmask 261126
    %407 = vst.msk [vmem:[#allocation2] sm:$0xc0] %vm406, %v404
    %v408 = vrot.slane %v401, 6
    %409 = vrot.lane.b32.xlu0 %v408, 32
    %v410 = vpop.permute.xlu0 %409
    %v411 = vsel %vm118, %v410, 0
    %413 = vmatpush.msra.mxu0 0.0
    %414 = vmatpush.msra.mxu0 0.0
    %415 = vmatpush.msra.mxu0 0.0
    %416 = vmatpush.msra.mxu0 0.0
    %417 = vmatpush.msra.mxu0 0.0
    %418 = vmatpush.msra.mxu0 0.0
    %419 = vmatpush.msra.mxu0 0.0
    %420 = vmatpush.msra.mxu0 0.0
    %421 = vmatpush.msra.mxu0 0.0
    %422 = vmatpush.msra.mxu0 0.0
    %423 = vmatpush.msra.mxu0 0.0
    %424 = vmatpush.msra.mxu0 0.0
    %425 = vmatpush.msra.mxu0 %v79
    %426 = vmatpush.msra.mxu0 %v78
    %427 = vmatpush.msra.mxu0 %v77
    %428 = vmatpush.msra.mxu0 %v76
    %429 = vmatmul.f32.gmra.mxu0 %v411
    %v430 = vpop.f32.mrf.mxu0
    %v431 = vadd.f32 0.0, %v430
    %432 = vdwg.mxu0
    %v433 = vadd.f32 %v116, %v431
    %v434 = vxor.u32 %v433, 2147483648
    %v435 = vmul.f32 %v434, 1.442695
    %v436 = vpow.pop %v435
    %v437 = vadd.f32 %v436, 1.0
    %v438 = vrcp.pop %v437
    %v439 = vmul.f32 %v437, %v438
    %v440 = vsub.f32 1.0, %v439
    %v441 = vmul.f32 %v438, %v440
    %v442 = vadd.f32 %v438, %v441
    %vm443 = vweird.f32 %v437
    %vm444 = vweird.f32 %v438
    %vm445 = vmor %vm443, %vm444
    %v446 = vsel %vm445, %v438, %v442
    %v447 = vand.u32 2147483647, %v437
    %vm448 = vcmp.eq.f32.partialorder %v447, 8.507059e+37
    %v449 = vand.u32 %v437, 2147483648
    %v450 = vor.u32 1.1754944e-38, %v449
    %v451 = vsel %vm448, %v450, %v446
    %v452 = vmul.f32 1.0, %v451
    %v453 = vtanh.pop %v433
    %v455 = vrot.slane %v395, 6
    %v457 = vmul.f32 %v452, %v455
    %459 = vrot.lane.b32.xlu0 %v453, 64
    %v460 = vpop.permute.xlu0 %459
    %v462 = vmul.f32 %v452, %v460
    %464 = vrot.lane.b32.xlu0 %v462, 32
    %v465 = vpop.permute.xlu0 %464
    %v467 = vadd.f32 %v457, %v465
    %v468 = vtanh.pop %v467
    %470 = vrot.lane.b32.xlu0 %v468, 64
    %v471 = vpop.permute.xlu0 %470
    %v473 = vmul.f32 %v452, %v471
    %475 = vrot.lane.b32.xlu0 %v473, 32
    %v476 = vpop.permute.xlu0 %475
    %478 = vst.msk [vmem:[#allocation2 + $0x8] sm:$0x3] %vm184, %v476
    %v479 = vsel %vm118, %v476, 0
    %481 = vmatpush.msra.mxu0 0.0
    %482 = vmatpush.msra.mxu0 0.0
    %483 = vmatpush.msra.mxu0 0.0
    %484 = vmatpush.msra.mxu0 0.0
    %485 = vmatpush.msra.mxu0 0.0
    %486 = vmatpush.msra.mxu0 0.0
    %487 = vmatpush.msra.mxu0 0.0
    %488 = vmatpush.msra.mxu0 0.0
    %489 = vmatpush.msra.mxu0 0.0
    %490 = vmatpush.msra.mxu0 0.0
    %491 = vmatpush.msra.mxu0 0.0
    %492 = vmatpush.msra.mxu0 0.0
    %493 = vmatpush.msra.mxu0 %v79
    %494 = vmatpush.msra.mxu0 %v78
    %495 = vmatpush.msra.mxu0 %v77
    %496 = vmatpush.msra.mxu0 %v76
    %497 = vmatmul.f32.gmra.mxu0 %v479
    %v498 = vpop.f32.mrf.mxu0
    %v499 = vadd.f32 0.0, %v498
    %500 = vdwg.mxu0
    %v502 = vrot.slane %v499, 6
    %v504 = vadd.f32 %v116, %v502
    %v505 = vxor.u32 %v504, 2147483648
    %v506 = vmul.f32 %v505, 1.442695
    %v507 = vpow.pop %v506
    %v508 = vadd.f32 %v507, 1.0
    %v509 = vrcp.pop %v508
    %v510 = vmul.f32 %v508, %v509
    %v511 = vsub.f32 1.0, %v510
    %v512 = vmul.f32 %v509, %v511
    %v513 = vadd.f32 %v509, %v512
    %vm514 = vweird.f32 %v508
    %vm515 = vweird.f32 %v509
    %vm516 = vmor %vm514, %vm515
    %v517 = vsel %vm516, %v509, %v513
    %v518 = vand.u32 2147483647, %v508
    %vm519 = vcmp.eq.f32.partialorder %v518, 8.507059e+37
    %v520 = vand.u32 %v508, 2147483648
    %v521 = vor.u32 1.1754944e-38, %v520
    %v522 = vsel %vm519, %v521, %v517
    %v523 = vmul.f32 1.0, %v522
    %v524 = vtanh.pop %v504
    %v526 = vrot.slane %v467, 6
    %v528 = vmul.f32 %v523, %v526
    %530 = vrot.lane.b32.xlu0 %v524, 64
    %v531 = vpop.permute.xlu0 %530
    %v533 = vmul.f32 %v523, %v531
    %535 = vrot.lane.b32.xlu0 %v533, 32
    %v536 = vpop.permute.xlu0 %535
    %v538 = vadd.f32 %v528, %v536
    %v539 = vtanh.pop %v538
    %541 = vrot.lane.b32.xlu0 %v539, 64
    %v542 = vpop.permute.xlu0 %541
    %v544 = vmul.f32 %v523, %v542
    %546 = vrot.lane.b32.xlu0 %v544, 32
    %v547 = vpop.permute.xlu0 %546
    %549 = vst.msk [vmem:[#allocation2 + $0x8] sm:$0xc] %vm256, %v547
    %v550 = vrot.slane %v544, 2
    %551 = vrot.lane.b32.xlu0 %v550, 32
    %v552 = vpop.permute.xlu0 %551
    %v553 = vsel %vm118, %v552, 0
    %555 = vmatpush.msra.mxu0 0.0
    %556 = vmatpush.msra.mxu0 0.0
    %557 = vmatpush.msra.mxu0 0.0
    %558 = vmatpush.msra.mxu0 0.0
    %559 = vmatpush.msra.mxu0 0.0
    %560 = vmatpush.msra.mxu0 0.0
    %561 = vmatpush.msra.mxu0 0.0
    %562 = vmatpush.msra.mxu0 0.0
    %563 = vmatpush.msra.mxu0 0.0
    %564 = vmatpush.msra.mxu0 0.0
    %565 = vmatpush.msra.mxu0 0.0
    %566 = vmatpush.msra.mxu0 0.0
    %567 = vmatpush.msra.mxu0 %v79
    %568 = vmatpush.msra.mxu0 %v78
    %569 = vmatpush.msra.mxu0 %v77
    %570 = vmatpush.msra.mxu0 %v76
    %571 = vmatmul.f32.gmra.mxu0 %v553
    %v572 = vpop.f32.mrf.mxu0
    %v573 = vadd.f32 0.0, %v572
    %574 = vdwg.mxu0
    %v576 = vrot.slane %v573, 4
    %v578 = vadd.f32 %v116, %v576
    %v579 = vxor.u32 %v578, 2147483648
    %v580 = vmul.f32 %v579, 1.442695
    %v581 = vpow.pop %v580
    %v582 = vadd.f32 %v581, 1.0
    %v583 = vrcp.pop %v582
    %v584 = vmul.f32 %v582, %v583
    %v585 = vsub.f32 1.0, %v584
    %v586 = vmul.f32 %v583, %v585
    %v587 = vadd.f32 %v583, %v586
    %vm588 = vweird.f32 %v582
    %vm589 = vweird.f32 %v583
    %vm590 = vmor %vm588, %vm589
    %v591 = vsel %vm590, %v583, %v587
    %v592 = vand.u32 2147483647, %v582
    %vm593 = vcmp.eq.f32.partialorder %v592, 8.507059e+37
    %v594 = vand.u32 %v582, 2147483648
    %v595 = vor.u32 1.1754944e-38, %v594
    %v596 = vsel %vm593, %v595, %v591
    %v597 = vmul.f32 1.0, %v596
    %v598 = vtanh.pop %v578
    %v600 = vrot.slane %v538, 6
    %v602 = vmul.f32 %v597, %v600
    %604 = vrot.lane.b32.xlu0 %v598, 64
    %v605 = vpop.permute.xlu0 %604
    %v607 = vmul.f32 %v597, %v605
    %609 = vrot.lane.b32.xlu0 %v607, 32
    %v610 = vpop.permute.xlu0 %609
    %v612 = vadd.f32 %v602, %v610
    %v613 = vtanh.pop %v612
    %615 = vrot.lane.b32.xlu0 %v613, 64
    %v616 = vpop.permute.xlu0 %615
    %v618 = vmul.f32 %v597, %v616
    %620 = vrot.lane.b32.xlu0 %v618, 32
    %v621 = vpop.permute.xlu0 %620
    %623 = vst.msk [vmem:[#allocation2 + $0x8] sm:$0x30] %vm331, %v621
    %v624 = vrot.slane %v618, 4
    %625 = vrot.lane.b32.xlu0 %v624, 32
    %v626 = vpop.permute.xlu0 %625
    %v627 = vsel %vm118, %v626, 0
    %629 = vmatpush.msra.mxu0 0.0
    %630 = vmatpush.msra.mxu0 0.0
    %631 = vmatpush.msra.mxu0 0.0
    %632 = vmatpush.msra.mxu0 0.0
    %633 = vmatpush.msra.mxu0 0.0
    %634 = vmatpush.msra.mxu0 0.0
    %635 = vmatpush.msra.mxu0 0.0
    %636 = vmatpush.msra.mxu0 0.0
    %637 = vmatpush.msra.mxu0 0.0
    %638 = vmatpush.msra.mxu0 0.0
    %639 = vmatpush.msra.mxu0 0.0
    %640 = vmatpush.msra.mxu0 0.0
    %641 = vmatpush.msra.mxu0 %v79
    %642 = vmatpush.msra.mxu0 %v78
    %643 = vmatpush.msra.mxu0 %v77
    %644 = vmatpush.msra.mxu0 %v76
    %645 = vmatmul.f32.gmra.mxu0 %v627
    %v646 = vpop.f32.mrf.mxu0
    %v647 = vadd.f32 0.0, %v646
    %648 = vdwg.mxu0
    %v650 = vrot.slane %v647, 2
    %v652 = vadd.f32 %v116, %v650
    %v653 = vxor.u32 %v652, 2147483648
    %v654 = vmul.f32 %v653, 1.442695
    %v655 = vpow.pop %v654
    %v656 = vadd.f32 %v655, 1.0
    %v657 = vrcp.pop %v656
    %v658 = vmul.f32 %v656, %v657
    %v659 = vsub.f32 1.0, %v658
    %v660 = vmul.f32 %v657, %v659
    %v661 = vadd.f32 %v657, %v660
    %vm662 = vweird.f32 %v656
    %vm663 = vweird.f32 %v657
    %vm664 = vmor %vm662, %vm663
    %v665 = vsel %vm664, %v657, %v661
    %v666 = vand.u32 2147483647, %v656
    %vm667 = vcmp.eq.f32.partialorder %v666, 8.507059e+37
    %v668 = vand.u32 %v656, 2147483648
    %v669 = vor.u32 1.1754944e-38, %v668
    %v670 = vsel %vm667, %v669, %v665
    %v671 = vmul.f32 1.0, %v670
    %v672 = vtanh.pop %v652
    %v674 = vrot.slane %v612, 6
    %v676 = vmul.f32 %v671, %v674
    %678 = vrot.lane.b32.xlu0 %v672, 64
    %v679 = vpop.permute.xlu0 %678
    %v681 = vmul.f32 %v671, %v679
    %683 = vrot.lane.b32.xlu0 %v681, 32
    %v684 = vpop.permute.xlu0 %683
    %v686 = vadd.f32 %v676, %v684
    %v687 = vtanh.pop %v686
    %689 = vrot.lane.b32.xlu0 %v687, 64
    %v690 = vpop.permute.xlu0 %689
    %v692 = vmul.f32 %v671, %v690
    %694 = vrot.lane.b32.xlu0 %v692, 32
    %v695 = vpop.permute.xlu0 %694
    %697 = vst.msk [vmem:[#allocation2 + $0x8] sm:$0xc0] %vm406, %v695
    %v698 = vld [vmem:[#allocation2] sm:$0xff]
    %v699 = vld [vmem:[#allocation2 + $0x8] sm:$0xff]
    %v700 = vld [vmem:[#allocation5] sm:$0xff]
    %v701 = vld [vmem:[#allocation5 + $0x8] sm:$0xff]
    %v702 = vld [vmem:[#allocation5 + $0x10] sm:$0xff]
    %v703 = vld [vmem:[#allocation5 + $0x18] sm:$0xff]
    %v704 = vld [vmem:[#allocation7] sm:$0xff]
    %v705 = vld [vmem:[#allocation7 + $0x8] sm:$0xff]
    %v706 = vld [vmem:[#allocation7 + $0x10] sm:$0xff]
    %v707 = vld [vmem:[#allocation7 + $0x18] sm:$0xff]
    %v708 = vld [vmem:[%s6] sm:$0x1]
    %v710 = vperm.slane %v708, 0
    %v713 = vsel %vm118, %v698, 0
    %v716 = vsel %vm118, %v699, 0
    %718 = vmatpush.msra.mxu0 0.0
    %719 = vmatpush.msra.mxu0 0.0
    %720 = vmatpush.msra.mxu0 0.0
    %721 = vmatpush.msra.mxu0 0.0
    %722 = vmatpush.msra.mxu0 0.0
    %723 = vmatpush.msra.mxu0 0.0
    %724 = vmatpush.msra.mxu0 0.0
    %725 = vmatpush.msra.mxu0 0.0
    %726 = vmatpush.msra.mxu0 0.0
    %727 = vmatpush.msra.mxu0 0.0
    %728 = vmatpush.msra.mxu0 0.0
    %729 = vmatpush.msra.mxu0 0.0
    %730 = vmatpush.msra.mxu0 %v703
    %731 = vmatpush.msra.mxu0 %v702
    %732 = vmatpush.msra.mxu0 %v701
    %733 = vmatpush.msra.mxu0 %v700
    %734 = vmatmul.f32.gmra.mxu0 %v713
    %v735 = vpop.f32.mrf.mxu0
    %v736 = vadd.f32 %v710, %v735
    %737 = vmatmul.f32.gmra.mxu0 %v716
    %v738 = vpop.f32.mrf.mxu0
    %v739 = vadd.f32 %v710, %v738
    %740 = vdwg.mxu0
    %741 = vmatpush.msra.mxu0 0.0
    %742 = vmatpush.msra.mxu0 0.0
    %743 = vmatpush.msra.mxu0 0.0
    %744 = vmatpush.msra.mxu0 0.0
    %745 = vmatpush.msra.mxu0 0.0
    %746 = vmatpush.msra.mxu0 0.0
    %747 = vmatpush.msra.mxu0 0.0
    %748 = vmatpush.msra.mxu0 0.0
    %749 = vmatpush.msra.mxu0 0.0
    %750 = vmatpush.msra.mxu0 0.0
    %751 = vmatpush.msra.mxu0 0.0
    %752 = vmatpush.msra.mxu0 0.0
    %753 = vmatpush.msra.mxu0 %v707
    %754 = vmatpush.msra.mxu0 %v706
    %755 = vmatpush.msra.mxu0 %v705
    %756 = vmatpush.msra.mxu0 %v704
    %757 = vmatmul.f32.gmra.mxu0 %v120
    %v758 = vpop.f32.mrf.mxu0
    %v759 = vadd.f32 0.0, %v758
    %760 = vdwg.mxu0
    %v761 = vadd.f32 %v736, %v759
    %v762 = vxor.u32 %v761, 2147483648
    %v763 = vmul.f32 %v762, 1.442695
    %v764 = vpow.pop %v763
    %v765 = vadd.f32 %v764, 1.0
    %v766 = vrcp.pop %v765
    %v767 = vmul.f32 %v765, %v766
    %v768 = vsub.f32 1.0, %v767
    %v769 = vmul.f32 %v766, %v768
    %v770 = vadd.f32 %v766, %v769
    %vm771 = vweird.f32 %v765
    %vm772 = vweird.f32 %v766
    %vm773 = vmor %vm771, %vm772
    %v774 = vsel %vm773, %v766, %v770
    %v775 = vand.u32 2147483647, %v765
    %vm776 = vcmp.eq.f32.partialorder %v775, 8.507059e+37
    %v777 = vand.u32 %v765, 2147483648
    %v778 = vor.u32 1.1754944e-38, %v777
    %v779 = vsel %vm776, %v778, %v774
    %v780 = vmul.f32 1.0, %v779
    %v781 = vtanh.pop %v761
    %v782 = vmul.f32 %v780, 0.0
    %784 = vrot.lane.b32.xlu0 %v781, 64
    %v785 = vpop.permute.xlu0 %784
    %v787 = vmul.f32 %v780, %v785
    %789 = vrot.lane.b32.xlu0 %v787, 32
    %v790 = vpop.permute.xlu0 %789
    %v792 = vadd.f32 %v782, %v790
    %v793 = vtanh.pop %v792
    %795 = vrot.lane.b32.xlu0 %v793, 64
    %v796 = vpop.permute.xlu0 %795
    %v798 = vmul.f32 %v780, %v796
    %800 = vrot.lane.b32.xlu0 %v798, 32
    %v801 = vpop.permute.xlu0 %800
    %v802 = vsel %vm118, %v801, 0
    %804 = vmatpush.msra.mxu0 0.0
    %805 = vmatpush.msra.mxu0 0.0
    %806 = vmatpush.msra.mxu0 0.0
    %807 = vmatpush.msra.mxu0 0.0
    %808 = vmatpush.msra.mxu0 0.0
    %809 = vmatpush.msra.mxu0 0.0
    %810 = vmatpush.msra.mxu0 0.0
    %811 = vmatpush.msra.mxu0 0.0
    %812 = vmatpush.msra.mxu0 0.0
    %813 = vmatpush.msra.mxu0 0.0
    %814 = vmatpush.msra.mxu0 0.0
    %815 = vmatpush.msra.mxu0 0.0
    %816 = vmatpush.msra.mxu0 %v707
    %817 = vmatpush.msra.mxu0 %v706
    %818 = vmatpush.msra.mxu0 %v705
    %819 = vmatpush.msra.mxu0 %v704
    %820 = vmatmul.f32.gmra.mxu0 %v802
    %v821 = vpop.f32.mrf.mxu0
    %v822 = vadd.f32 0.0, %v821
    %823 = vdwg.mxu0
    %v825 = vrot.slane %v822, 6
    %v827 = vadd.f32 %v736, %v825
    %v828 = vxor.u32 %v827, 2147483648
    %v829 = vmul.f32 %v828, 1.442695
    %v830 = vpow.pop %v829
    %v831 = vadd.f32 %v830, 1.0
    %v832 = vrcp.pop %v831
    %v833 = vmul.f32 %v831, %v832
    %v834 = vsub.f32 1.0, %v833
    %v835 = vmul.f32 %v832, %v834
    %v836 = vadd.f32 %v832, %v835
    %vm837 = vweird.f32 %v831
    %vm838 = vweird.f32 %v832
    %vm839 = vmor %vm837, %vm838
    %v840 = vsel %vm839, %v832, %v836
    %v841 = vand.u32 2147483647, %v831
    %vm842 = vcmp.eq.f32.partialorder %v841, 8.507059e+37
    %v843 = vand.u32 %v831, 2147483648
    %v844 = vor.u32 1.1754944e-38, %v843
    %v845 = vsel %vm842, %v844, %v840
    %v846 = vmul.f32 1.0, %v845
    %v847 = vtanh.pop %v827
    %v849 = vrot.slane %v792, 6
    %v851 = vmul.f32 %v846, %v849
    %853 = vrot.lane.b32.xlu0 %v847, 64
    %v854 = vpop.permute.xlu0 %853
    %v856 = vmul.f32 %v846, %v854
    %858 = vrot.lane.b32.xlu0 %v856, 32
    %v859 = vpop.permute.xlu0 %858
    %v861 = vadd.f32 %v851, %v859
    %v862 = vtanh.pop %v861
    %864 = vrot.lane.b32.xlu0 %v862, 64
    %v865 = vpop.permute.xlu0 %864
    %v867 = vmul.f32 %v846, %v865
    %v869 = vrot.slane %v867, 2
    %870 = vrot.lane.b32.xlu0 %v869, 32
    %v871 = vpop.permute.xlu0 %870
    %v872 = vsel %vm118, %v871, 0
    %874 = vmatpush.msra.mxu0 0.0
    %875 = vmatpush.msra.mxu0 0.0
    %876 = vmatpush.msra.mxu0 0.0
    %877 = vmatpush.msra.mxu0 0.0
    %878 = vmatpush.msra.mxu0 0.0
    %879 = vmatpush.msra.mxu0 0.0
    %880 = vmatpush.msra.mxu0 0.0
    %881 = vmatpush.msra.mxu0 0.0
    %882 = vmatpush.msra.mxu0 0.0
    %883 = vmatpush.msra.mxu0 0.0
    %884 = vmatpush.msra.mxu0 0.0
    %885 = vmatpush.msra.mxu0 0.0
    %886 = vmatpush.msra.mxu0 %v707
    %887 = vmatpush.msra.mxu0 %v706
    %888 = vmatpush.msra.mxu0 %v705
    %889 = vmatpush.msra.mxu0 %v704
    %890 = vmatmul.f32.gmra.mxu0 %v872
    %v891 = vpop.f32.mrf.mxu0
    %v892 = vadd.f32 0.0, %v891
    %893 = vdwg.mxu0
    %v895 = vrot.slane %v892, 4
    %v897 = vadd.f32 %v736, %v895
    %v898 = vxor.u32 %v897, 2147483648
    %v899 = vmul.f32 %v898, 1.442695
    %v900 = vpow.pop %v899
    %v901 = vadd.f32 %v900, 1.0
    %v902 = vrcp.pop %v901
    %v903 = vmul.f32 %v901, %v902
    %v904 = vsub.f32 1.0, %v903
    %v905 = vmul.f32 %v902, %v904
    %v906 = vadd.f32 %v902, %v905
    %vm907 = vweird.f32 %v901
    %vm908 = vweird.f32 %v902
    %vm909 = vmor %vm907, %vm908
    %v910 = vsel %vm909, %v902, %v906
    %v911 = vand.u32 2147483647, %v901
    %vm912 = vcmp.eq.f32.partialorder %v911, 8.507059e+37
    %v913 = vand.u32 %v901, 2147483648
    %v914 = vor.u32 1.1754944e-38, %v913
    %v915 = vsel %vm912, %v914, %v910
    %v916 = vmul.f32 1.0, %v915
    %v917 = vtanh.pop %v897
    %v919 = vrot.slane %v861, 6
    %v921 = vmul.f32 %v916, %v919
    %923 = vrot.lane.b32.xlu0 %v917, 64
    %v924 = vpop.permute.xlu0 %923
    %v926 = vmul.f32 %v916, %v924
    %928 = vrot.lane.b32.xlu0 %v926, 32
    %v929 = vpop.permute.xlu0 %928
    %v931 = vadd.f32 %v921, %v929
    %v932 = vtanh.pop %v931
    %934 = vrot.lane.b32.xlu0 %v932, 64
    %v935 = vpop.permute.xlu0 %934
    %v937 = vmul.f32 %v916, %v935
    %v939 = vrot.slane %v937, 4
    %940 = vrot.lane.b32.xlu0 %v939, 32
    %v941 = vpop.permute.xlu0 %940
    %v942 = vsel %vm118, %v941, 0
    %944 = vmatpush.msra.mxu0 0.0
    %945 = vmatpush.msra.mxu0 0.0
    %946 = vmatpush.msra.mxu0 0.0
    %947 = vmatpush.msra.mxu0 0.0
    %948 = vmatpush.msra.mxu0 0.0
    %949 = vmatpush.msra.mxu0 0.0
    %950 = vmatpush.msra.mxu0 0.0
    %951 = vmatpush.msra.mxu0 0.0
    %952 = vmatpush.msra.mxu0 0.0
    %953 = vmatpush.msra.mxu0 0.0
    %954 = vmatpush.msra.mxu0 0.0
    %955 = vmatpush.msra.mxu0 0.0
    %956 = vmatpush.msra.mxu0 %v707
    %957 = vmatpush.msra.mxu0 %v706
    %958 = vmatpush.msra.mxu0 %v705
    %959 = vmatpush.msra.mxu0 %v704
    %960 = vmatmul.f32.gmra.mxu0 %v942
    %v961 = vpop.f32.mrf.mxu0
    %v962 = vadd.f32 0.0, %v961
    %963 = vdwg.mxu0
    %v965 = vrot.slane %v962, 2
    %v967 = vadd.f32 %v736, %v965
    %v968 = vxor.u32 %v967, 2147483648
    %v969 = vmul.f32 %v968, 1.442695
    %v970 = vpow.pop %v969
    %v971 = vadd.f32 %v970, 1.0
    %v972 = vrcp.pop %v971
    %v973 = vmul.f32 %v971, %v972
    %v974 = vsub.f32 1.0, %v973
    %v975 = vmul.f32 %v972, %v974
    %v976 = vadd.f32 %v972, %v975
    %vm977 = vweird.f32 %v971
    %vm978 = vweird.f32 %v972
    %vm979 = vmor %vm977, %vm978
    %v980 = vsel %vm979, %v972, %v976
    %v981 = vand.u32 2147483647, %v971
    %vm982 = vcmp.eq.f32.partialorder %v981, 8.507059e+37
    %v983 = vand.u32 %v971, 2147483648
    %v984 = vor.u32 1.1754944e-38, %v983
    %v985 = vsel %vm982, %v984, %v980
    %v986 = vmul.f32 1.0, %v985
    %v987 = vtanh.pop %v967
    %v989 = vrot.slane %v931, 6
    %v991 = vmul.f32 %v986, %v989
    %993 = vrot.lane.b32.xlu0 %v987, 64
    %v994 = vpop.permute.xlu0 %993
    %v996 = vmul.f32 %v986, %v994
    %998 = vrot.lane.b32.xlu0 %v996, 32
    %v999 = vpop.permute.xlu0 %998
    %v1001 = vadd.f32 %v991, %v999
    %v1002 = vtanh.pop %v1001
    %1004 = vrot.lane.b32.xlu0 %v1002, 64
    %v1005 = vpop.permute.xlu0 %1004
    %v1007 = vmul.f32 %v986, %v1005
    %v1009 = vrot.slane %v1007, 6
    %1010 = vrot.lane.b32.xlu0 %v1009, 32
    %v1011 = vpop.permute.xlu0 %1010
    %v1012 = vsel %vm118, %v1011, 0
    %1014 = vmatpush.msra.mxu0 0.0
    %1015 = vmatpush.msra.mxu0 0.0
    %1016 = vmatpush.msra.mxu0 0.0
    %1017 = vmatpush.msra.mxu0 0.0
    %1018 = vmatpush.msra.mxu0 0.0
    %1019 = vmatpush.msra.mxu0 0.0
    %1020 = vmatpush.msra.mxu0 0.0
    %1021 = vmatpush.msra.mxu0 0.0
    %1022 = vmatpush.msra.mxu0 0.0
    %1023 = vmatpush.msra.mxu0 0.0
    %1024 = vmatpush.msra.mxu0 0.0
    %1025 = vmatpush.msra.mxu0 0.0
    %1026 = vmatpush.msra.mxu0 %v707
    %1027 = vmatpush.msra.mxu0 %v706
    %1028 = vmatpush.msra.mxu0 %v705
    %1029 = vmatpush.msra.mxu0 %v704
    %1030 = vmatmul.f32.gmra.mxu0 %v1012
    %v1031 = vpop.f32.mrf.mxu0
    %v1032 = vadd.f32 0.0, %v1031
    %1033 = vdwg.mxu0
    %v1034 = vadd.f32 %v739, %v1032
    %v1035 = vxor.u32 %v1034, 2147483648
    %v1036 = vmul.f32 %v1035, 1.442695
    %v1037 = vpow.pop %v1036
    %v1038 = vadd.f32 %v1037, 1.0
    %v1039 = vrcp.pop %v1038
    %v1040 = vmul.f32 %v1038, %v1039
    %v1041 = vsub.f32 1.0, %v1040
    %v1042 = vmul.f32 %v1039, %v1041
    %v1043 = vadd.f32 %v1039, %v1042
    %vm1044 = vweird.f32 %v1038
    %vm1045 = vweird.f32 %v1039
    %vm1046 = vmor %vm1044, %vm1045
    %v1047 = vsel %vm1046, %v1039, %v1043
    %v1048 = vand.u32 2147483647, %v1038
    %vm1049 = vcmp.eq.f32.partialorder %v1048, 8.507059e+37
    %v1050 = vand.u32 %v1038, 2147483648
    %v1051 = vor.u32 1.1754944e-38, %v1050
    %v1052 = vsel %vm1049, %v1051, %v1047
    %v1053 = vmul.f32 1.0, %v1052
    %v1054 = vtanh.pop %v1034
    %v1056 = vrot.slane %v1001, 6
    %v1058 = vmul.f32 %v1053, %v1056
    %1060 = vrot.lane.b32.xlu0 %v1054, 64
    %v1061 = vpop.permute.xlu0 %1060
    %v1063 = vmul.f32 %v1053, %v1061
    %1065 = vrot.lane.b32.xlu0 %v1063, 32
    %v1066 = vpop.permute.xlu0 %1065
    %v1068 = vadd.f32 %v1058, %v1066
    %v1069 = vtanh.pop %v1068
    %1071 = vrot.lane.b32.xlu0 %v1069, 64
    %v1072 = vpop.permute.xlu0 %1071
    %v1074 = vmul.f32 %v1053, %v1072
    %1076 = vrot.lane.b32.xlu0 %v1074, 32
    %v1077 = vpop.permute.xlu0 %1076
    %v1078 = vsel %vm118, %v1077, 0
    %1080 = vmatpush.msra.mxu0 0.0
    %1081 = vmatpush.msra.mxu0 0.0
    %1082 = vmatpush.msra.mxu0 0.0
    %1083 = vmatpush.msra.mxu0 0.0
    %1084 = vmatpush.msra.mxu0 0.0
    %1085 = vmatpush.msra.mxu0 0.0
    %1086 = vmatpush.msra.mxu0 0.0
    %1087 = vmatpush.msra.mxu0 0.0
    %1088 = vmatpush.msra.mxu0 0.0
    %1089 = vmatpush.msra.mxu0 0.0
    %1090 = vmatpush.msra.mxu0 0.0
    %1091 = vmatpush.msra.mxu0 0.0
    %1092 = vmatpush.msra.mxu0 %v707
    %1093 = vmatpush.msra.mxu0 %v706
    %1094 = vmatpush.msra.mxu0 %v705
    %1095 = vmatpush.msra.mxu0 %v704
    %1096 = vmatmul.f32.gmra.mxu0 %v1078
    %v1097 = vpop.f32.mrf.mxu0
    %v1098 = vadd.f32 0.0, %v1097
    %1099 = vdwg.mxu0
    %v1101 = vrot.slane %v1098, 6
    %v1103 = vadd.f32 %v739, %v1101
    %v1104 = vxor.u32 %v1103, 2147483648
    %v1105 = vmul.f32 %v1104, 1.442695
    %v1106 = vpow.pop %v1105
    %v1107 = vadd.f32 %v1106, 1.0
    %v1108 = vrcp.pop %v1107
    %v1109 = vmul.f32 %v1107, %v1108
    %v1110 = vsub.f32 1.0, %v1109
    %v1111 = vmul.f32 %v1108, %v1110
    %v1112 = vadd.f32 %v1108, %v1111
    %vm1113 = vweird.f32 %v1107
    %vm1114 = vweird.f32 %v1108
    %vm1115 = vmor %vm1113, %vm1114
    %v1116 = vsel %vm1115, %v1108, %v1112
    %v1117 = vand.u32 2147483647, %v1107
    %vm1118 = vcmp.eq.f32.partialorder %v1117, 8.507059e+37
    %v1119 = vand.u32 %v1107, 2147483648
    %v1120 = vor.u32 1.1754944e-38, %v1119
    %v1121 = vsel %vm1118, %v1120, %v1116
    %v1122 = vmul.f32 1.0, %v1121
    %v1123 = vtanh.pop %v1103
    %v1125 = vrot.slane %v1068, 6
    %v1127 = vmul.f32 %v1122, %v1125
    %1129 = vrot.lane.b32.xlu0 %v1123, 64
    %v1130 = vpop.permute.xlu0 %1129
    %v1132 = vmul.f32 %v1122, %v1130
    %1134 = vrot.lane.b32.xlu0 %v1132, 32
    %v1135 = vpop.permute.xlu0 %1134
    %v1137 = vadd.f32 %v1127, %v1135
    %v1138 = vtanh.pop %v1137
    %1140 = vrot.lane.b32.xlu0 %v1138, 64
    %v1141 = vpop.permute.xlu0 %1140
    %v1143 = vmul.f32 %v1122, %v1141
    %v1145 = vrot.slane %v1143, 2
    %1146 = vrot.lane.b32.xlu0 %v1145, 32
    %v1147 = vpop.permute.xlu0 %1146
    %v1148 = vsel %vm118, %v1147, 0
    %1150 = vmatpush.msra.mxu0 0.0
    %1151 = vmatpush.msra.mxu0 0.0
    %1152 = vmatpush.msra.mxu0 0.0
    %1153 = vmatpush.msra.mxu0 0.0
    %1154 = vmatpush.msra.mxu0 0.0
    %1155 = vmatpush.msra.mxu0 0.0
    %1156 = vmatpush.msra.mxu0 0.0
    %1157 = vmatpush.msra.mxu0 0.0
    %1158 = vmatpush.msra.mxu0 0.0
    %1159 = vmatpush.msra.mxu0 0.0
    %1160 = vmatpush.msra.mxu0 0.0
    %1161 = vmatpush.msra.mxu0 0.0
    %1162 = vmatpush.msra.mxu0 %v707
    %1163 = vmatpush.msra.mxu0 %v706
    %1164 = vmatpush.msra.mxu0 %v705
    %1165 = vmatpush.msra.mxu0 %v704
    %1166 = vmatmul.f32.gmra.mxu0 %v1148
    %v1167 = vpop.f32.mrf.mxu0
    %v1168 = vadd.f32 0.0, %v1167
    %1169 = vdwg.mxu0
    %v1171 = vrot.slane %v1168, 4
    %v1173 = vadd.f32 %v739, %v1171
    %v1174 = vxor.u32 %v1173, 2147483648
    %v1175 = vmul.f32 %v1174, 1.442695
    %v1176 = vpow.pop %v1175
    %v1177 = vadd.f32 %v1176, 1.0
    %v1178 = vrcp.pop %v1177
    %v1179 = vmul.f32 %v1177, %v1178
    %v1180 = vsub.f32 1.0, %v1179
    %v1181 = vmul.f32 %v1178, %v1180
    %v1182 = vadd.f32 %v1178, %v1181
    %vm1183 = vweird.f32 %v1177
    %vm1184 = vweird.f32 %v1178
    %vm1185 = vmor %vm1183, %vm1184
    %v1186 = vsel %vm1185, %v1178, %v1182
    %v1187 = vand.u32 2147483647, %v1177
    %vm1188 = vcmp.eq.f32.partialorder %v1187, 8.507059e+37
    %v1189 = vand.u32 %v1177, 2147483648
    %v1190 = vor.u32 1.1754944e-38, %v1189
    %v1191 = vsel %vm1188, %v1190, %v1186
    %v1192 = vmul.f32 1.0, %v1191
    %v1193 = vtanh.pop %v1173
    %v1195 = vrot.slane %v1137, 6
    %v1197 = vmul.f32 %v1192, %v1195
    %1199 = vrot.lane.b32.xlu0 %v1193, 64
    %v1200 = vpop.permute.xlu0 %1199
    %v1202 = vmul.f32 %v1192, %v1200
    %1204 = vrot.lane.b32.xlu0 %v1202, 32
    %v1205 = vpop.permute.xlu0 %1204
    %v1207 = vadd.f32 %v1197, %v1205
    %v1208 = vtanh.pop %v1207
    %1210 = vrot.lane.b32.xlu0 %v1208, 64
    %v1211 = vpop.permute.xlu0 %1210
    %v1213 = vmul.f32 %v1192, %v1211
    %v1215 = vrot.slane %v1213, 4
    %1216 = vrot.lane.b32.xlu0 %v1215, 32
    %v1217 = vpop.permute.xlu0 %1216
    %v1218 = vsel %vm118, %v1217, 0
    %1220 = vmatpush.msra.mxu0 0.0
    %1221 = vmatpush.msra.mxu0 0.0
    %1222 = vmatpush.msra.mxu0 0.0
    %1223 = vmatpush.msra.mxu0 0.0
    %1224 = vmatpush.msra.mxu0 0.0
    %1225 = vmatpush.msra.mxu0 0.0
    %1226 = vmatpush.msra.mxu0 0.0
    %1227 = vmatpush.msra.mxu0 0.0
    %1228 = vmatpush.msra.mxu0 0.0
    %1229 = vmatpush.msra.mxu0 0.0
    %1230 = vmatpush.msra.mxu0 0.0
    %1231 = vmatpush.msra.mxu0 0.0
    %1232 = vmatpush.msra.mxu0 %v707
    %1233 = vmatpush.msra.mxu0 %v706
    %1234 = vmatpush.msra.mxu0 %v705
    %1235 = vmatpush.msra.mxu0 %v704
    %1236 = vmatmul.f32.gmra.mxu0 %v1218
    %v1237 = vpop.f32.mrf.mxu0
    %v1238 = vadd.f32 0.0, %v1237
    %1239 = vdwg.mxu0
    %v1241 = vrot.slane %v1238, 2
    %v1243 = vadd.f32 %v739, %v1241
    %v1244 = vxor.u32 %v1243, 2147483648
    %v1245 = vmul.f32 %v1244, 1.442695
    %v1246 = vpow.pop %v1245
    %v1247 = vadd.f32 %v1246, 1.0
    %v1248 = vrcp.pop %v1247
    %v1249 = vmul.f32 %v1247, %v1248
    %v1250 = vsub.f32 1.0, %v1249
    %v1251 = vmul.f32 %v1248, %v1250
    %v1252 = vadd.f32 %v1248, %v1251
    %vm1253 = vweird.f32 %v1247
    %vm1254 = vweird.f32 %v1248
    %vm1255 = vmor %vm1253, %vm1254
    %v1256 = vsel %vm1255, %v1248, %v1252
    %v1257 = vand.u32 2147483647, %v1247
    %vm1258 = vcmp.eq.f32.partialorder %v1257, 8.507059e+37
    %v1259 = vand.u32 %v1247, 2147483648
    %v1260 = vor.u32 1.1754944e-38, %v1259
    %v1261 = vsel %vm1258, %v1260, %v1256
    %v1262 = vmul.f32 1.0, %v1261
    %v1263 = vtanh.pop %v1243
    %v1265 = vrot.slane %v1207, 6
    %v1267 = vmul.f32 %v1262, %v1265
    %1269 = vrot.lane.b32.xlu0 %v1263, 64
    %v1270 = vpop.permute.xlu0 %1269
    %v1272 = vmul.f32 %v1262, %v1270
    %1274 = vrot.lane.b32.xlu0 %v1272, 32
    %v1275 = vpop.permute.xlu0 %1274
    %v1277 = vadd.f32 %v1267, %v1275
    %v1278 = vtanh.pop %v1277
    %1280 = vrot.lane.b32.xlu0 %v1278, 64
    %v1281 = vpop.permute.xlu0 %1280
    %v1283 = vmul.f32 %v1262, %v1281
    %1285 = vrot.lane.b32.xlu0 %v1283, 32
    %v1286 = vpop.permute.xlu0 %1285
    %1288 = vst.msk [vmem:[%s7 - $0x6] sm:$0xc0] %vm406, %v1286
    // Predicated region
    $region42: #{lstm_forward.1} parent=1 // pred_check
      _
    $region43: #{lstm_forward.1} parent=1 // pred_check_branch
      %1290 = sbr.rel (0) target = $region45
    $region44: #{lstm_forward.1} parent=1 // pred_region
      _
    $region45: #{lstm_forward.1} parent=1 // pred_fallthru
      _
    // Predicated region
    $region46: #{lstm_forward.1} parent=1 // pred_check
      _
    $region47: #{lstm_forward.1} parent=1 // pred_check_branch
      %1292 = sbr.rel (0) target = $region49
    $region48: #{lstm_forward.1} parent=1 // pred_region
      _
    $region49: #{lstm_forward.1} parent=1 // pred_fallthru
      _
    %1293 = vsyncpa [#allocation4], 1
    %1294 = vsyncpa [#allocation6], 1

</llo_original>
